<compile_context>
chip_gen: v7x
topology: tpu7x:2x2x1
jax: 0.10.0
libtpu: 0.0.40
codegen_flags: <defaults>
</compile_context>

<pallas_src>
import functools

import jax
import jax.numpy as jnp
from jax import lax
from jax.experimental import pallas as pl
from jax.experimental.pallas import tpu as pltpu

DEFAULT_THRESHOLD = 0.005

# Above the 32 MiB scoped default, below v7x's 64 MiB physical VMEM
# (v5e / v6e have 128 MiB, so this is safe everywhere).
_VMEM_LIMIT_BYTES = 48 * 1024 * 1024


# ----------------------------------------------------------------------------
# Tiling helper
# ----------------------------------------------------------------------------
def _pick_tile(dim, pref, aligns):
    """Largest multiple of an alignment that divides `dim` and is <= `pref`.

    Tries each alignment in `aligns` (e.g. (128, 8)); only falls back to the
    full dimension when nothing divides (a full-dim block is always legal).
    """
    if dim <= pref:
        return dim
    for align in aligns:
        best = 0
        t = align
        while t <= pref:
            if dim % t == 0:
                best = t
            t += align
        if best:
            return best
    # TODO(synk): pad + mask edge tiles for pathological sizes (e.g. prime K).
    return dim


# ----------------------------------------------------------------------------
# SharableLinear weight prep:  fold Binarizer(piggymask) into the bf16 cast
# ----------------------------------------------------------------------------
def _prep_weight(weight, piggymask, threshold):
    w = weight
    if piggymask is not None:
        # Binarizer: piggymask <= threshold -> 0 ; > threshold -> 1 (times W).
        w = jnp.where(piggymask > threshold, w, jnp.zeros_like(w))
    return w.astype(jnp.bfloat16)


# ----------------------------------------------------------------------------
# SharableLinear kernel:  y = x @ W^T (+ bias), W in native (Nout, K) layout
# ----------------------------------------------------------------------------
def _make_linear_kernel(use_bias):
    def kernel(*refs):
        if use_bias:
            x_ref, w_ref, b_ref, o_ref, acc_ref = refs
        else:
            x_ref, w_ref, o_ref, acc_ref = refs

        k = pl.program_id(2)

        @pl.when(k == 0)
        def _():
            acc_ref[...] = jnp.zeros_like(acc_ref[...])

        # bf16 x bf16 -> f32 MXU contraction; weight kept in its native
        # (out_features, in_features) layout (contract trailing K of both).
        acc_ref[...] += lax.dot_general(
            x_ref[...], w_ref[...],
            dimension_numbers=(((1,), (1,)), ((), ())),
            preferred_element_type=jnp.float32)

        @pl.when(k == pl.num_programs(2) - 1)
        def _():
            r = acc_ref[...]
            if use_bias:
                r = r + b_ref[...]           # (1, tn) broadcast, f32
            o_ref[...] = r.astype(o_ref.dtype)

    return kernel


def sharable_linear(x2d, weight_bf16, bias=None, *, out_dtype=jnp.bfloat16,
                    tm_pref=256, tn_pref=256, tk_pref=512):
    """x2d: (M, K); weight_bf16: (Nout, K) bf16, already mask-binarized."""
    M, K = x2d.shape
    Nout, Kw = weight_bf16.shape
    assert Kw == K
    use_bias = bias is not None

    tm = _pick_tile(M, tm_pref, (128, 8))      # sublane dim
    tn = _pick_tile(Nout, tn_pref, (128,))     # lane dim of out / sublane of W
    tk = _pick_tile(K, tk_pref, (128,))        # lane dim of x and W
    grid = (M // tm, Nout // tn, K // tk)

    inputs = [x2d.astype(jnp.bfloat16), weight_bf16]
    in_specs = [
        pl.BlockSpec((tm, tk), lambda i, j, k: (i, k)),
        pl.BlockSpec((tn, tk), lambda i, j, k: (j, k)),
    ]
    if use_bias:
        inputs.append(bias.reshape(1, Nout).astype(jnp.float32))
        in_specs.append(pl.BlockSpec((1, tn), lambda i, j, k: (0, j)))

    return pl.pallas_call(
        _make_linear_kernel(use_bias),
        out_shape=jax.ShapeDtypeStruct((M, Nout), out_dtype),
        grid_spec=pltpu.PrefetchScalarGridSpec(
            num_scalar_prefetch=0,
            grid=grid,
            in_specs=in_specs,
            out_specs=pl.BlockSpec((tm, tn), lambda i, j, k: (i, j)),
            scratch_shapes=[pltpu.VMEM((tm, tn), jnp.float32)],
        ),
        compiler_params=pltpu.CompilerParams(
            dimension_semantics=("parallel", "parallel", "arbitrary"),
            vmem_limit_bytes=_VMEM_LIMIT_BYTES),
    )(*inputs)


# ----------------------------------------------------------------------------
# Attention core:  softmax(q k^T * scale) v per (batch*head), flash-style
# ----------------------------------------------------------------------------
def _make_attn_kernel(scale):
    def kernel(q_ref, k_ref, v_ref, o_ref, m_sc, l_sc, acc_sc):
        ki = pl.program_id(2)

        @pl.when(ki == 0)
        def _():
            m_sc[...] = jnp.full_like(m_sc[...], -jnp.inf)
            l_sc[...] = jnp.zeros_like(l_sc[...])
            acc_sc[...] = jnp.zeros_like(acc_sc[...])

        # bf16 q/k -> f32 scores on the MXU.
        s = jnp.einsum('bqd,bkd->bqk', q_ref[...], k_ref[...],
                       preferred_element_type=jnp.float32) * scale

        m_prev = m_sc[...]
        m_new = jnp.maximum(m_prev, s.max(axis=-1, keepdims=True))
        alpha = jnp.exp(m_prev - m_new)
        p = jnp.exp(s - m_new)
        l_sc[...] = alpha * l_sc[...] + p.sum(axis=-1, keepdims=True)
        acc_sc[...] = alpha * acc_sc[...] + jnp.einsum(
            'bqk,bkd->bqd', p.astype(v_ref.dtype), v_ref[...],
            preferred_element_type=jnp.float32)
        m_sc[...] = m_new

        @pl.when(ki == pl.num_programs(2) - 1)
        def _():
            o_ref[...] = (acc_sc[...] *
                          pl.reciprocal(l_sc[...], approx=True)
                          ).astype(o_ref.dtype)

    return kernel


def _attention_core(q3, k3, v3, scale, *, tq_pref=512, tkv_pref=512):
    """q3: (B*H, N, Dh) bf16 ; k3, v3: (B*H, Nc, Dh) bf16  ->  (B*H, N, Dh) bf16."""
    BH, N, Dh = q3.shape
    _, Nc, _ = k3.shape
    tq = _pick_tile(N, tq_pref, (128, 8))
    tkv = _pick_tile(Nc, tkv_pref, (128, 8))
    grid = (BH, N // tq, Nc // tkv)

    return pl.pallas_call(
        _make_attn_kernel(float(scale)),
        out_shape=jax.ShapeDtypeStruct((BH, N, Dh), q3.dtype),
        grid_spec=pltpu.PrefetchScalarGridSpec(
            num_scalar_prefetch=0,
            grid=grid,
            in_specs=[
                pl.BlockSpec((1, tq, Dh), lambda b, qi, ki: (b, qi, 0)),
                pl.BlockSpec((1, tkv, Dh), lambda b, qi, ki: (b, ki, 0)),
                pl.BlockSpec((1, tkv, Dh), lambda b, qi, ki: (b, ki, 0)),
            ],
            out_specs=pl.BlockSpec((1, tq, Dh), lambda b, qi, ki: (b, qi, 0)),
            scratch_shapes=[pltpu.VMEM((1, tq, 1), jnp.float32),
                            pltpu.VMEM((1, tq, 1), jnp.float32),
                            pltpu.VMEM((1, tq, Dh), jnp.float32)],
        ),
        compiler_params=pltpu.CompilerParams(
            dimension_semantics=("parallel", "parallel", "arbitrary"),
            vmem_limit_bytes=_VMEM_LIMIT_BYTES),
    )(q3, k3, v3)


# ----------------------------------------------------------------------------
# Full SharableAttention forward
# ----------------------------------------------------------------------------
@functools.partial(jax.jit, static_argnames=("heads", "threshold"))
def sharable_attention(x, wq, mq, wkv, mkv, wout, bout, mout, context=None,
                       *, heads=4, threshold=DEFAULT_THRESHOLD):
    """x: (B, N, query_dim).  w*: PyTorch-layout (out_features, in_features)."""
    B, N, Dq = x.shape
    inner = wq.shape[0]
    assert inner % heads == 0
    dim_head = inner // heads
    scale = dim_head ** -0.5

    wq_b = _prep_weight(wq, mq, threshold)
    wkv_b = _prep_weight(wkv, mkv, threshold)
    wout_b = _prep_weight(wout, mout, threshold)

    x2d = x.reshape(B * N, Dq)
    if context is None:
        # Fused q + kv projection: x read once, single launch, j-axis has 3x
        # more parallel blocks (keeps both v7x TensorCores busy).
        w_qkv = jnp.concatenate([wq_b, wkv_b], axis=0)       # (3*inner, Dq) bf16
        qkv = sharable_linear(x2d, w_qkv)                     # (B*N, 3*inner) bf16
        q2d = qkv[:, :inner]
        k2d = qkv[:, inner:2 * inner]
        v2d = qkv[:, 2 * inner:]
        Nc = N
    else:
        Nc = context.shape[1]
        q2d = sharable_linear(x2d, wq_b)
        kv = sharable_linear(context.reshape(B * Nc, context.shape[-1]), wkv_b)
        k2d = kv[:, :inner]
        v2d = kv[:, inner:]

    # 'b n (h d) -> (b h) n d' (bf16 layout plumbing on the host; see TODO above).
    def split_heads(t, n):
        return (t.reshape(B, n, heads, dim_head)
                  .transpose(0, 2, 1, 3)
                  .reshape(B * heads, n, dim_head))

    q3, k3, v3 = split_heads(q2d, N), split_heads(k2d, Nc), split_heads(v2d, Nc)

    # TODO(synk): optional boolean attention mask and dropout > 0 not implemented.
    o3 = _attention_core(q3, k3, v3, scale)                   # (B*H, N, Dh) bf16

    # '(b h) n d -> b n (h d)' and the biased output projection (f32 out).
    o2d = (o3.reshape(B, heads, N, dim_head)
              .transpose(0, 2, 1, 3)
              .reshape(B * N, inner))
    out = sharable_linear(o2d, wout_b, bout, out_dtype=jnp.float32)
    return out.reshape(B, N, wout.shape[0])


# ----------------------------------------------------------------------------
# Pure-JAX reference mirroring the module (same bf16 operand rounding points)
# ----------------------------------------------------------------------------
def _reference(x, wq, mq, wkv, mkv, wout, bout, mout, heads, threshold,
               context=None):
    def prep(w, m):
        if m is not None:
            w = jnp.where(m > threshold, w, jnp.zeros_like(w))
        return w.astype(jnp.bfloat16)

    def lin(t, w_b, b=None):
        y = jnp.einsum('...k,nk->...n', t.astype(jnp.bfloat16), w_b,
                       preferred_element_type=jnp.float32)
        if b is not None:
            y = y + b
        return y

    ctx = x if context is None else context
    q = lin(x, prep(wq, mq))
    kv = lin(ctx, prep(wkv, mkv))
    inner = wq.shape[0]
    dh = inner // heads
    k, v = kv[..., :inner], kv[..., inner:]

    B, N, _ = x.shape
    Nc = ctx.shape[1]

    def sh(t, n):
        return t.reshape(B, n, heads, dh).transpose(0, 2, 1, 3)

    qh, kh, vh = sh(q, N), sh(k, Nc), sh(v, Nc)
    sim = jnp.einsum('bhid,bhjd->bhij',
                     qh.astype(jnp.bfloat16), kh.astype(jnp.bfloat16),
                     preferred_element_type=jnp.float32) * dh ** -0.5
    attn = jax.nn.softmax(sim, axis=-1)
    oh = jnp.einsum('bhij,bhjd->bhid',
                    attn.astype(jnp.bfloat16), vh.astype(jnp.bfloat16),
                    preferred_element_type=jnp.float32)
    o = oh.transpose(0, 2, 1, 3).reshape(B, N, inner)
    return lin(o, prep(wout, mout), bout)


if __name__ == "__main__":
    # SharableAttention(query_dim=32, heads=4, dim_head=64) on a (2, 16, 32) input.
    B, N, Dq = 2, 16, 32
    heads, dim_head = 4, 64
    inner = heads * dim_head  # 256

    key = jax.random.PRNGKey(0)
    kx, k1, k2, k3, k4, k5, k6 = jax.random.split(key, 7)

    x = jax.random.normal(kx, (B, N, Dq), jnp.float32)

    wq = jax.random.normal(k1, (inner, Dq), jnp.float32) * 0.1          # to_q (no bias)
    wkv = jax.random.normal(k2, (2 * inner, Dq), jnp.float32) * 0.1     # to_kv (no bias)
    wout = jax.random.normal(k3, (Dq, inner), jnp.float32) * 0.1        # to_out
    bout = jax.random.normal(k4, (Dq,), jnp.float32) * 0.1

    # piggymasks around the threshold so the Binarizer yields a mix of 0s and 1s;
    # to_kv's piggymask is left None to exercise the unmasked SharableLinear path.
    mq = 0.005 + 0.01 * jax.random.normal(k5, (inner, Dq), jnp.float32)
    mout = 0.005 + 0.01 * jax.random.normal(k6, (Dq, inner), jnp.float32)
    mkv = None

    out = sharable_attention(x, wq, mq, wkv, mkv, wout, bout, mout,
                             heads=heads, threshold=DEFAULT_THRESHOLD)
    out = jax.block_until_ready(out)

    ref = _reference(x, wq, mq, wkv, mkv, wout, bout, mout, heads,
                     DEFAULT_THRESHOLD)

    assert out.shape == (B, N, Dq)
    max_err = float(jnp.max(jnp.abs(out - ref)))
    assert jnp.allclose(out, ref, rtol=2e-2, atol=2e-2), max_err

    print("KERNEL_OK")
</pallas_src>

<mosaic_0001>
module attributes {stable_mosaic.version = 11 : i64} {
  func.func @kernel(%arg0: i32, %arg1: i32, %arg2: i32, %arg3: memref<32x32xbf16, #tpu.memory_space<vmem>>, %arg4: memref<256x32xbf16, #tpu.memory_space<vmem>>, %arg5: memref<32x256xbf16, #tpu.memory_space<vmem>>, %arg6: memref<32x256xf32, #tpu.memory_space<vmem>>) attributes {dimension_semantics = [#tpu.dimension_semantics<parallel>, #tpu.dimension_semantics<parallel>, #tpu.dimension_semantics<arbitrary>], iteration_bounds = array<i64: 1, 3, 1>, scalar_prefetch = 0 : i64, scratch_operands = 1 : i64, tpu.core_type = #tpu.core_type<tc>, window_params = [{transform_indices = @transform_0, window_bounds = array<i64: 32, 32>}, {transform_indices = @transform_1, window_bounds = array<i64: 256, 32>}, {transform_indices = @transform_2, window_bounds = array<i64: 32, 256>}]} {
    %c0_i32 = arith.constant 0 : i32
    %0 = arith.cmpi eq, %arg2, %c0_i32 : i32
    %1 = arith.extui %0 : i1 to i32
    %c0_i32_0 = arith.constant 0 : i32
    %2 = arith.cmpi ne, %1, %c0_i32_0 : i32
    scf.if %2 {
      %cst_10 = arith.constant 0.000000e+00 : f32
      %12 = vector.broadcast %cst_10 : f32 to vector<32x256xf32>
      %c0_11 = arith.constant 0 : index
      %c0_12 = arith.constant 0 : index
      %13 = vector.load %arg6[%c0_11, %c0_12] : memref<32x256xf32, #tpu.memory_space<vmem>>, vector<32x256xf32>
      tpu.vector_store %arg6[%c0_11, %c0_12], %12 {strides = array<i32>} : memref<32x256xf32, #tpu.memory_space<vmem>>, vector<32x256xf32>,
    } else {
    }
    %c0 = arith.constant 0 : index
    %c0_1 = arith.constant 0 : index
    %3 = vector.load %arg6[%c0, %c0_1] : memref<32x256xf32, #tpu.memory_space<vmem>>, vector<32x256xf32>
    %c0_2 = arith.constant 0 : index
    %c0_3 = arith.constant 0 : index
    %4 = vector.load %arg3[%c0_2, %c0_3] : memref<32x32xbf16, #tpu.memory_space<vmem>>, vector<32x32xbf16>
    %c0_4 = arith.constant 0 : index
    %c0_5 = arith.constant 0 : index
    %5 = vector.load %arg4[%c0_4, %c0_5] : memref<256x32xbf16, #tpu.memory_space<vmem>>, vector<256x32xbf16>
    %cst = arith.constant dense<0.000000e+00> : vector<32x256xf32>
    %6 = tpu.matmul %4, %5, %cst {dimension_numbers = #tpu.dot_dimension_numbers<[1], [1], [0], [0], [0, 0, 1, 0], [], []>} : vector<32x32xbf16>, vector<256x32xbf16>, vector<32x256xf32> -> vector<32x256xf32>
    %7 = arith.addf %3, %6 : vector<32x256xf32>
    %c0_6 = arith.constant 0 : index
    %c0_7 = arith.constant 0 : index
    %8 = vector.load %arg6[%c0_6, %c0_7] : memref<32x256xf32, #tpu.memory_space<vmem>>, vector<32x256xf32>
    tpu.vector_store %arg6[%c0_6, %c0_7], %7 {strides = array<i32>} : memref<32x256xf32, #tpu.memory_space<vmem>>, vector<32x256xf32>,
    %c0_i32_8 = arith.constant 0 : i32
    %9 = arith.cmpi eq, %arg2, %c0_i32_8 : i32
    %10 = arith.extui %9 : i1 to i32
    %c0_i32_9 = arith.constant 0 : i32
    %11 = arith.cmpi ne, %10, %c0_i32_9 : i32
    scf.if %11 {
      %c0_10 = arith.constant 0 : index
      %c0_11 = arith.constant 0 : index
      %12 = vector.load %arg6[%c0_10, %c0_11] : memref<32x256xf32, #tpu.memory_space<vmem>>, vector<32x256xf32>
      %13 = arith.truncf %12 : vector<32x256xf32> to vector<32x256xbf16>
      %c0_12 = arith.constant 0 : index
      %c0_13 = arith.constant 0 : index
      %14 = vector.load %arg5[%c0_12, %c0_13] : memref<32x256xbf16, #tpu.memory_space<vmem>>, vector<32x256xbf16>
      tpu.vector_store %arg5[%c0_12, %c0_13], %13 {strides = array<i32>} : memref<32x256xbf16, #tpu.memory_space<vmem>>, vector<32x256xbf16>,
    } else {
    }
    return
  }
  func.func @transform_0(%arg0: i32, %arg1: i32, %arg2: i32) -> (i32, i32) {
    %c0_i32 = arith.constant 0 : i32
    return %arg0, %arg2 : i32, i32
  }
  func.func @transform_1(%arg0: i32, %arg1: i32, %arg2: i32) -> (i32, i32) {
    %c0_i32 = arith.constant 0 : i32
    return %arg1, %arg2 : i32, i32
  }
  func.func @transform_2(%arg0: i32, %arg1: i32, %arg2: i32) -> (i32, i32) {
    %c0_i32 = arith.constant 0 : i32
    return %arg0, %arg1 : i32, i32
  }
}

module attributes {stable_mosaic.version = 11 : i64} {
  func.func @kernel(%arg0: i32, %arg1: i32, %arg2: i32, %arg3: memref<1x16x64xbf16, #tpu.memory_space<vmem>>, %arg4: memref<1x16x64xbf16, #tpu.memory_space<vmem>>, %arg5: memref<1x16x64xbf16, #tpu.memory_space<vmem>>, %arg6: memref<1x16x64xbf16, #tpu.memory_space<vmem>>, %arg7: memref<1x16x1xf32, #tpu.memory_space<vmem>>, %arg8: memref<1x16x1xf32, #tpu.memory_space<vmem>>, %arg9: memref<1x16x64xf32, #tpu.memory_space<vmem>>) attributes {dimension_semantics = [#tpu.dimension_semantics<parallel>, #tpu.dimension_semantics<parallel>, #tpu.dimension_semantics<arbitrary>], iteration_bounds = array<i64: 8, 1, 1>, scalar_prefetch = 0 : i64, scratch_operands = 3 : i64, tpu.core_type = #tpu.core_type<tc>, window_params = [{transform_indices = @transform_0, window_bounds = array<i64: 1, 16, 64>}, {transform_indices = @transform_1, window_bounds = array<i64: 1, 16, 64>}, {transform_indices = @transform_2, window_bounds = array<i64: 1, 16, 64>}, {transform_indices = @transform_3, window_bounds = array<i64: 1, 16, 64>}]} {
    %c0_i32 = arith.constant 0 : i32
    %0 = arith.cmpi eq, %arg2, %c0_i32 : i32
    %1 = arith.extui %0 : i1 to i32
    %c0_i32_0 = arith.constant 0 : i32
    %2 = arith.cmpi ne, %1, %c0_i32_0 : i32
    scf.if %2 {
      %cst_33 = arith.constant 0xFF800000 : f32
      %35 = vector.broadcast %cst_33 : f32 to vector<1x16x1xf32>
      %c0_34 = arith.constant 0 : index
      %c0_35 = arith.constant 0 : index
      %c0_36 = arith.constant 0 : index
      %36 = vector.load %arg7[%c0_34, %c0_35, %c0_36] : memref<1x16x1xf32, #tpu.memory_space<vmem>>, vector<1x16x1xf32>
      tpu.vector_store %arg7[%c0_34, %c0_35, %c0_36], %35 {strides = array<i32>} : memref<1x16x1xf32, #tpu.memory_space<vmem>>, vector<1x16x1xf32>,
      %cst_37 = arith.constant 0.000000e+00 : f32
      %37 = vector.broadcast %cst_37 : f32 to vector<1x16x1xf32>
      %c0_38 = arith.constant 0 : index
      %c0_39 = arith.constant 0 : index
      %c0_40 = arith.constant 0 : index
      %38 = vector.load %arg8[%c0_38, %c0_39, %c0_40] : memref<1x16x1xf32, #tpu.memory_space<vmem>>, vector<1x16x1xf32>
      tpu.vector_store %arg8[%c0_38, %c0_39, %c0_40], %37 {strides = array<i32>} : memref<1x16x1xf32, #tpu.memory_space<vmem>>, vector<1x16x1xf32>,
      %cst_41 = arith.constant 0.000000e+00 : f32
      %39 = vector.broadcast %cst_41 : f32 to vector<1x16x64xf32>
      %c0_42 = arith.constant 0 : index
      %c0_43 = arith.constant 0 : index
      %c0_44 = arith.constant 0 : index
      %40 = vector.load %arg9[%c0_42, %c0_43, %c0_44] : memref<1x16x64xf32, #tpu.memory_space<vmem>>, vector<1x16x64xf32>
      tpu.vector_store %arg9[%c0_42, %c0_43, %c0_44], %39 {strides = array<i32>} : memref<1x16x64xf32, #tpu.memory_space<vmem>>, vector<1x16x64xf32>,
    } else {
    }
    %c0 = arith.constant 0 : index
    %c0_1 = arith.constant 0 : index
    %c0_2 = arith.constant 0 : index
    %3 = vector.load %arg3[%c0, %c0_1, %c0_2] : memref<1x16x64xbf16, #tpu.memory_space<vmem>>, vector<1x16x64xbf16>
    %c0_3 = arith.constant 0 : index
    %c0_4 = arith.constant 0 : index
    %c0_5 = arith.constant 0 : index
    %4 = vector.load %arg4[%c0_3, %c0_4, %c0_5] : memref<1x16x64xbf16, #tpu.memory_space<vmem>>, vector<1x16x64xbf16>
    "tpu.trace_start"() <{level = 10 : i32, message = "bqd,bkd->bqk"}> : () -> ()
    %cst = arith.constant dense<0.000000e+00> : vector<1x16x16xf32>
    %5 = tpu.matmul %3, %4, %cst {dimension_numbers = #tpu.dot_dimension_numbers<[2], [2], [1], [1], [0, 0, 0, 1, 1, 1], [0], [0]>} : vector<1x16x64xbf16>, vector<1x16x64xbf16>, vector<1x16x16xf32> -> vector<1x16x16xf32>
    "tpu.trace_stop"() : () -> ()
    %cst_6 = arith.constant 1.250000e-01 : f32
    %6 = vector.broadcast %cst_6 : f32 to vector<1x16x16xf32>
    %7 = arith.mulf %5, %6 : vector<1x16x16xf32>
    %c0_7 = arith.constant 0 : index
    %c0_8 = arith.constant 0 : index
    %c0_9 = arith.constant 0 : index
    %8 = vector.load %arg7[%c0_7, %c0_8, %c0_9] : memref<1x16x1xf32, #tpu.memory_space<vmem>>, vector<1x16x1xf32>
    %cst_10 = arith.constant dense<0xFF800000> : vector<1x16xf32>
    %9 = vector.multi_reduction <maximumf>, %7, %cst_10 [2] : vector<1x16x16xf32> to vector<1x16xf32>
    %10 = vector.shape_cast %9 : vector<1x16xf32> to vector<1x16x1xf32>
    %11 = arith.maximumf %8, %10 : vector<1x16x1xf32>
    %12 = arith.subf %8, %11 : vector<1x16x1xf32>
    %13 = math.exp %12 : vector<1x16x1xf32>
    %14 = vector.broadcast %11 : vector<1x16x1xf32> to vector<1x16x16xf32>
    %15 = arith.subf %7, %14 : vector<1x16x16xf32>
    %16 = math.exp %15 : vector<1x16x16xf32>
    %c0_11 = arith.constant 0 : index
    %c0_12 = arith.constant 0 : index
    %c0_13 = arith.constant 0 : index
    %17 = vector.load %arg8[%c0_11, %c0_12, %c0_13] : memref<1x16x1xf32, #tpu.memory_space<vmem>>, vector<1x16x1xf32>
    %18 = arith.mulf %13, %17 : vector<1x16x1xf32>
    %cst_14 = arith.constant dense<0.000000e+00> : vector<1x16xf32>
    %19 = vector.multi_reduction <add>, %16, %cst_14 [2] : vector<1x16x16xf32> to vector<1x16xf32>
    %20 = vector.shape_cast %19 : vector<1x16xf32> to vector<1x16x1xf32>
    %21 = arith.addf %18, %20 : vector<1x16x1xf32>
    %c0_15 = arith.constant 0 : index
    %c0_16 = arith.constant 0 : index
    %c0_17 = arith.constant 0 : index
    %22 = vector.load %arg8[%c0_15, %c0_16, %c0_17] : memref<1x16x1xf32, #tpu.memory_space<vmem>>, vector<1x16x1xf32>
    tpu.vector_store %arg8[%c0_15, %c0_16, %c0_17], %21 {strides = array<i32>} : memref<1x16x1xf32, #tpu.memory_space<vmem>>, vector<1x16x1xf32>,
    %c0_18 = arith.constant 0 : index
    %c0_19 = arith.constant 0 : index
    %c0_20 = arith.constant 0 : index
    %23 = vector.load %arg9[%c0_18, %c0_19, %c0_20] : memref<1x16x64xf32, #tpu.memory_space<vmem>>, vector<1x16x64xf32>
    %24 = vector.broadcast %13 : vector<1x16x1xf32> to vector<1x16x64xf32>
    %25 = arith.mulf %24, %23 : vector<1x16x64xf32>
    %26 = arith.truncf %16 : vector<1x16x16xf32> to vector<1x16x16xbf16>
    %c0_21 = arith.constant 0 : index
    %c0_22 = arith.constant 0 : index
    %c0_23 = arith.constant 0 : index
    %27 = vector.load %arg5[%c0_21, %c0_22, %c0_23] : memref<1x16x64xbf16, #tpu.memory_space<vmem>>, vector<1x16x64xbf16>
    "tpu.trace_start"() <{level = 10 : i32, message = "bqk,bkd->bqd"}> : () -> ()
    %cst_24 = arith.constant dense<0.000000e+00> : vector<1x16x64xf32>
    %28 = tpu.matmul %26, %27, %cst_24 {dimension_numbers = #tpu.dot_dimension_numbers<[2], [1], [1], [2], [0, 0, 0, 1, 1, 2], [0], [0]>} : vector<1x16x16xbf16>, vector<1x16x64xbf16>, vector<1x16x64xf32> -> vector<1x16x64xf32>
    "tpu.trace_stop"() : () -> ()
    %29 = arith.addf %25, %28 : vector<1x16x64xf32>
    %c0_25 = arith.constant 0 : index
    %c0_26 = arith.constant 0 : index
    %c0_27 = arith.constant 0 : index
    %30 = vector.load %arg9[%c0_25, %c0_26, %c0_27] : memref<1x16x64xf32, #tpu.memory_space<vmem>>, vector<1x16x64xf32>
    tpu.vector_store %arg9[%c0_25, %c0_26, %c0_27], %29 {strides = array<i32>} : memref<1x16x64xf32, #tpu.memory_space<vmem>>, vector<1x16x64xf32>,
    %c0_28 = arith.constant 0 : index
    %c0_29 = arith.constant 0 : index
    %c0_30 = arith.constant 0 : index
    %31 = vector.load %arg7[%c0_28, %c0_29, %c0_30] : memref<1x16x1xf32, #tpu.memory_space<vmem>>, vector<1x16x1xf32>
    tpu.vector_store %arg7[%c0_28, %c0_29, %c0_30], %11 {strides = array<i32>} : memref<1x16x1xf32, #tpu.memory_space<vmem>>, vector<1x16x1xf32>,
    %c0_i32_31 = arith.constant 0 : i32
    %32 = arith.cmpi eq, %arg2, %c0_i32_31 : i32
    %33 = arith.extui %32 : i1 to i32
    %c0_i32_32 = arith.constant 0 : i32
    %34 = arith.cmpi ne, %33, %c0_i32_32 : i32
    scf.if %34 {
      %c0_33 = arith.constant 0 : index
      %c0_34 = arith.constant 0 : index
      %c0_35 = arith.constant 0 : index
      %35 = vector.load %arg9[%c0_33, %c0_34, %c0_35] : memref<1x16x64xf32, #tpu.memory_space<vmem>>, vector<1x16x64xf32>
      %c0_36 = arith.constant 0 : index
      %c0_37 = arith.constant 0 : index
      %c0_38 = arith.constant 0 : index
      %36 = vector.load %arg8[%c0_36, %c0_37, %c0_38] : memref<1x16x1xf32, #tpu.memory_space<vmem>>, vector<1x16x1xf32>
      %37 = tpu.reciprocal %36 {approx = true} : vector<1x16x1xf32> -> vector<1x16x1xf32>
      %38 = vector.broadcast %37 : vector<1x16x1xf32> to vector<1x16x64xf32>
      %39 = arith.mulf %35, %38 : vector<1x16x64xf32>
      %40 = arith.truncf %39 : vector<1x16x64xf32> to vector<1x16x64xbf16>
      %c0_39 = arith.constant 0 : index
      %c0_40 = arith.constant 0 : index
      %c0_41 = arith.constant 0 : index
      %41 = vector.load %arg6[%c0_39, %c0_40, %c0_41] : memref<1x16x64xbf16, #tpu.memory_space<vmem>>, vector<1x16x64xbf16>
      tpu.vector_store %arg6[%c0_39, %c0_40, %c0_41], %40 {strides = array<i32>} : memref<1x16x64xbf16, #tpu.memory_space<vmem>>, vector<1x16x64xbf16>,
    } else {
    }
    return
  }
  func.func @transform_0(%arg0: i32, %arg1: i32, %arg2: i32) -> (i32, i32, i32) {
    %c0_i32 = arith.constant 0 : i32
    %c0_i32_0 = arith.constant 0 : i32
    return %arg0, %arg1, %c0_i32 : i32, i32, i32
  }
  func.func @transform_1(%arg0: i32, %arg1: i32, %arg2: i32) -> (i32, i32, i32) {
    %c0_i32 = arith.constant 0 : i32
    %c0_i32_0 = arith.constant 0 : i32
    return %arg0, %arg2, %c0_i32 : i32, i32, i32
  }
  func.func @transform_2(%arg0: i32, %arg1: i32, %arg2: i32) -> (i32, i32, i32) {
    %c0_i32 = arith.constant 0 : i32
    %c0_i32_0 = arith.constant 0 : i32
    return %arg0, %arg2, %c0_i32 : i32, i32, i32
  }
  func.func @transform_3(%arg0: i32, %arg1: i32, %arg2: i32) -> (i32, i32, i32) {
    %c0_i32 = arith.constant 0 : i32
    %c0_i32_0 = arith.constant 0 : i32
    return %arg0, %arg1, %c0_i32 : i32, i32, i32
  }
}

module attributes {stable_mosaic.version = 11 : i64} {
  func.func @kernel(%arg0: i32, %arg1: i32, %arg2: i32, %arg3: memref<32x256xbf16, #tpu.memory_space<vmem>>, %arg4: memref<32x256xbf16, #tpu.memory_space<vmem>>, %arg5: memref<1x32xf32, #tpu.memory_space<vmem>>, %arg6: memref<32x32xf32, #tpu.memory_space<vmem>>, %arg7: memref<32x32xf32, #tpu.memory_space<vmem>>) attributes {dimension_semantics = [#tpu.dimension_semantics<parallel>, #tpu.dimension_semantics<parallel>, #tpu.dimension_semantics<arbitrary>], iteration_bounds = array<i64: 1, 1, 1>, scalar_prefetch = 0 : i64, scratch_operands = 1 : i64, tpu.core_type = #tpu.core_type<tc>, window_params = [{transform_indices = @transform_0, window_bounds = array<i64: 32, 256>}, {transform_indices = @transform_1, window_bounds = array<i64: 32, 256>}, {transform_indices = @transform_2, window_bounds = array<i64: 1, 32>}, {transform_indices = @transform_3, window_bounds = array<i64: 32, 32>}]} {
    %c0_i32 = arith.constant 0 : i32
    %0 = arith.cmpi eq, %arg2, %c0_i32 : i32
    %1 = arith.extui %0 : i1 to i32
    %c0_i32_0 = arith.constant 0 : i32
    %2 = arith.cmpi ne, %1, %c0_i32_0 : i32
    scf.if %2 {
      %cst_10 = arith.constant 0.000000e+00 : f32
      %12 = vector.broadcast %cst_10 : f32 to vector<32x32xf32>
      %c0_11 = arith.constant 0 : index
      %c0_12 = arith.constant 0 : index
      %13 = vector.load %arg7[%c0_11, %c0_12] : memref<32x32xf32, #tpu.memory_space<vmem>>, vector<32x32xf32>
      tpu.vector_store %arg7[%c0_11, %c0_12], %12 {strides = array<i32>} : memref<32x32xf32, #tpu.memory_space<vmem>>, vector<32x32xf32>,
    } else {
    }
    %c0 = arith.constant 0 : index
    %c0_1 = arith.constant 0 : index
    %3 = vector.load %arg7[%c0, %c0_1] : memref<32x32xf32, #tpu.memory_space<vmem>>, vector<32x32xf32>
    %c0_2 = arith.constant 0 : index
    %c0_3 = arith.constant 0 : index
    %4 = vector.load %arg3[%c0_2, %c0_3] : memref<32x256xbf16, #tpu.memory_space<vmem>>, vector<32x256xbf16>
    %c0_4 = arith.constant 0 : index
    %c0_5 = arith.constant 0 : index
    %5 = vector.load %arg4[%c0_4, %c0_5] : memref<32x256xbf16, #tpu.memory_space<vmem>>, vector<32x256xbf16>
    %cst = arith.constant dense<0.000000e+00> : vector<32x32xf32>
    %6 = tpu.matmul %4, %5, %cst {dimension_numbers = #tpu.dot_dimension_numbers<[1], [1], [0], [0], [0, 0, 1, 0], [], []>} : vector<32x256xbf16>, vector<32x256xbf16>, vector<32x32xf32> -> vector<32x32xf32>
    %7 = arith.addf %3, %6 : vector<32x32xf32>
    %c0_6 = arith.constant 0 : index
    %c0_7 = arith.constant 0 : index
    %8 = vector.load %arg7[%c0_6, %c0_7] : memref<32x32xf32, #tpu.memory_space<vmem>>, vector<32x32xf32>
    tpu.vector_store %arg7[%c0_6, %c0_7], %7 {strides = array<i32>} : memref<32x32xf32, #tpu.memory_space<vmem>>, vector<32x32xf32>,
    %c0_i32_8 = arith.constant 0 : i32
    %9 = arith.cmpi eq, %arg2, %c0_i32_8 : i32
    %10 = arith.extui %9 : i1 to i32
    %c0_i32_9 = arith.constant 0 : i32
    %11 = arith.cmpi ne, %10, %c0_i32_9 : i32
    scf.if %11 {
      %c0_10 = arith.constant 0 : index
      %c0_11 = arith.constant 0 : index
      %12 = vector.load %arg7[%c0_10, %c0_11] : memref<32x32xf32, #tpu.memory_space<vmem>>, vector<32x32xf32>
      %c0_12 = arith.constant 0 : index
      %c0_13 = arith.constant 0 : index
      %13 = vector.load %arg5[%c0_12, %c0_13] : memref<1x32xf32, #tpu.memory_space<vmem>>, vector<1x32xf32>
      %14 = vector.broadcast %13 : vector<1x32xf32> to vector<32x32xf32>
      %15 = arith.addf %12, %14 : vector<32x32xf32>
      %c0_14 = arith.constant 0 : index
      %c0_15 = arith.constant 0 : index
      %16 = vector.load %arg6[%c0_14, %c0_15] : memref<32x32xf32, #tpu.memory_space<vmem>>, vector<32x32xf32>
      tpu.vector_store %arg6[%c0_14, %c0_15], %15 {strides = array<i32>} : memref<32x32xf32, #tpu.memory_space<vmem>>, vector<32x32xf32>,
    } else {
    }
    return
  }
  func.func @transform_0(%arg0: i32, %arg1: i32, %arg2: i32) -> (i32, i32) {
    %c0_i32 = arith.constant 0 : i32
    return %arg0, %arg2 : i32, i32
  }
  func.func @transform_1(%arg0: i32, %arg1: i32, %arg2: i32) -> (i32, i32) {
    %c0_i32 = arith.constant 0 : i32
    return %arg1, %arg2 : i32, i32
  }
  func.func @transform_2(%arg0: i32, %arg1: i32, %arg2: i32) -> (i32, i32) {
    %c0_i32 = arith.constant 0 : i32
    %c0_i32_0 = arith.constant 0 : i32
    return %c0_i32, %arg1 : i32, i32
  }
  func.func @transform_3(%arg0: i32, %arg1: i32, %arg2: i32) -> (i32, i32) {
    %c0_i32 = arith.constant 0 : i32
    return %arg0, %arg1 : i32, i32
  }
}

</mosaic_0001>

<llo_original>
// kernel: sharable_attention.5
$region0: #{sharable_attention.5}
  #allocation0 [shape = 'u32[]', space=smem, size = 0x4, offset = 0x4, fixed_abs, tag = 'smem constant byte address 0x4 - core index']
  #allocation1 [shape = 'u32[144,128]{1,0:T(1,128)}', space=vmem, size = 0x12000, scoped, tag = 'internal scratch']
  #allocation2 [shape = 'f32[32,32]{1,0:T(8,128)}', space=vmem, size = 0x4000, scoped, tag = 'scratch operand']
  %s0 = inlined_call_operand.vmem [shape: bf16[32,256], index: 0, kind: input, shape index: {}]
  %s1 = inlined_call_operand.vmem [shape: bf16[32,256], index: 1, kind: input, shape index: {}]
  %s2 = inlined_call_operand.vmem [shape: f32[1,32], index: 2, kind: input, shape index: {}]
  %s3 = inlined_call_operand.hbm [shape: f32[32,32], index: 3, kind: output, shape index: {}]
  %s4 = sld [smem:[#allocation0]]
  $region30: #{sharable_attention.5} parent=0
    _
  %s6 = ssub.s32 1, %s4
  %s7 = scalar_select 0, %s6, %s4
  $region1: #{sharable_attention.5} parent=0
    #allocation3 [shape = 'u8[16384]{0}', space=vmem, size = 0x4000, scoped, tag = 'output window, operand 0, single buffered']
    #allocation4 [shape = 's32[1]{0}', space=sflag, size = 0x4, scoped, tag = 'scoped memory for sharable_attention.5']
    %8 = vsyncpa [#allocation4], 0
    // Predicated region
    $region2: #{sharable_attention.5} parent=1 // pred_check
      _
    $region3: #{sharable_attention.5} parent=1 // pred_check_branch
      %10 = sbr.rel (0) target = $region5
    $region4: #{sharable_attention.5} parent=1 // pred_region
      _
    $region5: #{sharable_attention.5} parent=1 // pred_fallthru
      _
    // Predicated region
    $region6: #{sharable_attention.5} parent=1 // pred_check
      _
    $region7: #{sharable_attention.5} parent=1 // pred_check_branch
      %12 = sbr.rel (0) target = $region9
    $region8: #{sharable_attention.5} parent=1 // pred_region
      _
    $region9: #{sharable_attention.5} parent=1 // pred_fallthru
      _
    // Predicated region
    $region10: #{sharable_attention.5} parent=1 // pred_check
      _
    $region11: #{sharable_attention.5} parent=1 // pred_check_branch
      %14 = sbr.rel (0) target = $region13
    $region12: #{sharable_attention.5} parent=1 // pred_region
      _
    $region13: #{sharable_attention.5} parent=1 // pred_fallthru
      _
    %p16 = scmp.eq.s32.totalorder 0, 0
    // Predicated region
    $region14: #{sharable_attention.5} parent=1 // pred_check
      %p17 = pneg %p16
    $region15: #{sharable_attention.5} parent=1 // pred_check_branch
      %19 = sbr.rel (%p17) target = $region17
    $region16: #{sharable_attention.5} parent=1 // pred_region
      %vm20 = vcmask 261120
      %21 = vst.msk [vmem:[#allocation2] sm:$0xff] %vm20, 0.0
      %22 = vst.msk [vmem:[#allocation2 + $0x8] sm:$0xff] %vm20, 0.0
      %23 = vst.msk [vmem:[#allocation2 + $0x10] sm:$0xff] %vm20, 0.0
      %24 = vst.msk [vmem:[#allocation2 + $0x18] sm:$0xff] %vm20, 0.0
    $region17: #{sharable_attention.5} parent=1 // pred_fallthru
      _
    %v25 = vld [vmem:[#allocation2] sm:$0xff]
    %v26 = vld [vmem:[#allocation2 + $0x8] sm:$0xff]
    %v27 = vld [vmem:[#allocation2 + $0x10] sm:$0xff]
    %v28 = vld [vmem:[#allocation2 + $0x18] sm:$0xff]
    %v29 = vld [vmem:[%s0] sm:$0xff]
    %v30 = vld [vmem:[%s0 + $0x8] sm:$0xff]
    %v31 = vld [vmem:[%s0 + $0x10] sm:$0xff]
    %v32 = vld [vmem:[%s0 + $0x18] sm:$0xff]
    %v33 = vld [vmem:[%s1] sm:$0xff]
    %v34 = vld [vmem:[%s1 + $0x8] sm:$0xff]
    %v35 = vld [vmem:[%s1 + $0x10] sm:$0xff]
    %v36 = vld [vmem:[%s1 + $0x18] sm:$0xff]
    %v41 = vunpack.c.l.b16 %v29
    %v42 = vunpack.c.h.b16 %v29
    %v43 = vunpack.c.l.b16 %v30
    %v44 = vunpack.c.h.b16 %v30
    %v45 = vunpack.c.l.b16 %v31
    %v46 = vunpack.c.h.b16 %v31
    %v47 = vunpack.c.l.b16 %v32
    %v48 = vunpack.c.h.b16 %v32
    %v49 = vpack.c.b16 %v43, %v41
    %v50 = vpack.c.b16 %v44, %v42
    %v51 = vpack.c.b16 %v47, %v45
    %v52 = vpack.c.b16 %v48, %v46
    %v61 = vunpack.c.l.b16 %v33
    %v62 = vunpack.c.h.b16 %v33
    %v63 = vunpack.c.l.b16 %v34
    %v64 = vunpack.c.h.b16 %v34
    %v65 = vunpack.c.l.b16 %v35
    %v66 = vunpack.c.h.b16 %v35
    %v67 = vunpack.c.l.b16 %v36
    %v68 = vunpack.c.h.b16 %v36
    %v69 = vpack.c.b16 %v63, %v61
    %v70 = vpack.c.b16 %v64, %v62
    %v71 = vpack.c.b16 %v67, %v65
    %v72 = vpack.c.b16 %v68, %v66
    %77 = vmatprep.subr.bf16.mxu0 %v70
    %78 = vmatpush1.bf16.xpose.msra.mxu0 %v69
    %79 = vmatprep.subr.bf16.mxu0 %v72
    %80 = vmatpush1.bf16.xpose.msra.mxu0 %v71
    %81 = vmatprep.subr.bf16.mxu0 0
    %82 = vmatpush1.bf16.xpose.msra.mxu0 0
    %83 = vmatprep.subr.bf16.mxu0 0
    %84 = vmatpush1.bf16.xpose.msra.mxu0 0
    %85 = vmatprep.subr.bf16.mxu0 0
    %86 = vmatpush1.bf16.xpose.msra.mxu0 0
    %87 = vmatprep.subr.bf16.mxu0 0
    %88 = vmatpush1.bf16.xpose.msra.mxu0 0
    %89 = vmatprep.subr.bf16.mxu0 0
    %90 = vmatpush1.bf16.xpose.msra.mxu0 0
    %91 = vmatprep.subr.bf16.mxu0 0
    %92 = vmatpush1.bf16.xpose.msra.mxu0 0
    %93 = vmatprep.subr.bf16.mxu0 0
    %94 = vmatpush1.bf16.xpose.msra.mxu0 0
    %95 = vmatprep.subr.bf16.mxu0 0
    %96 = vmatpush1.bf16.xpose.msra.mxu0 0
    %97 = vmatprep.subr.bf16.mxu0 0
    %98 = vmatpush1.bf16.xpose.msra.mxu0 0
    %99 = vmatprep.subr.bf16.mxu0 0
    %100 = vmatpush1.bf16.xpose.msra.mxu0 0
    %101 = vmatprep.subr.bf16.mxu0 0
    %102 = vmatpush1.bf16.xpose.msra.mxu0 0
    %103 = vmatprep.subr.bf16.mxu0 0
    %104 = vmatpush1.bf16.xpose.msra.mxu0 0
    %105 = vmatprep.subr.bf16.mxu0 0
    %106 = vmatpush1.bf16.xpose.msra.mxu0 0
    %107 = vmatprep.subr.bf16.mxu0 0
    %108 = vmatpush1.bf16.xpose.msra.mxu0 0
    %109 = vmatprep.mubr.bf16.mxu0 %v50
    %110 = vmatmul.mubr.bf16.gmra.mrb[0].mxu0 %v49
    %v111 = vpop.f32.mrb[0].mxu0
    %v112 = vadd.f32 0.0, %v111
    %v113 = vpop.f32.mrb[0].mxu0
    %v114 = vpop.f32.mrb[0].mxu0
    %v115 = vadd.f32 0.0, %v114
    %v116 = vpop.f32.mrb[0].mxu0
    %117 = vmatprep.mubr.bf16.mxu0 %v52
    %118 = vmatmul.mubr.bf16.gmra.mrb[0].mxu0 %v51
    %v119 = vpop.f32.mrb[0].mxu0
    %v120 = vadd.f32 0.0, %v119
    %v121 = vpop.f32.mrb[0].mxu0
    %v122 = vpop.f32.mrb[0].mxu0
    %v123 = vadd.f32 0.0, %v122
    %v124 = vpop.f32.mrb[0].mxu0
    %125 = vdwg.mxu0
    %v126 = vadd.f32 %v25, %v112
    %v127 = vadd.f32 %v26, %v115
    %v128 = vadd.f32 %v27, %v120
    %v129 = vadd.f32 %v28, %v123
    %vm130 = vcmask 261120
    %131 = vst.msk [vmem:[#allocation2] sm:$0xff] %vm130, %v126
    %132 = vst.msk [vmem:[#allocation2 + $0x8] sm:$0xff] %vm130, %v127
    %133 = vst.msk [vmem:[#allocation2 + $0x10] sm:$0xff] %vm130, %v128
    %134 = vst.msk [vmem:[#allocation2 + $0x18] sm:$0xff] %vm130, %v129
    // Predicated region
    $region18: #{sharable_attention.5} parent=1 // pred_check
      %p135 = pneg %p16
    $region19: #{sharable_attention.5} parent=1 // pred_check_branch
      %137 = sbr.rel (%p135) target = $region21
    $region20: #{sharable_attention.5} parent=1 // pred_region
      %v138 = vld [vmem:[#allocation2] sm:$0xff]
      %v139 = vld [vmem:[#allocation2 + $0x8] sm:$0xff]
      %v140 = vld [vmem:[#allocation2 + $0x10] sm:$0xff]
      %v141 = vld [vmem:[#allocation2 + $0x18] sm:$0xff]
      %v142 = vld [vmem:[%s2] sm:$0x1]
      %v144 = vlaneseq
      %v145 = vshrl.u32 %v144, 7
      %v146 = vsub.s32 0, %v145
      %v147 = vrot.slane %v142, %v146
      %v149 = vadd.f32 %v138, %v147
      %v150 = vadd.f32 %v139, %v147
      %v151 = vadd.f32 %v140, %v147
      %v152 = vadd.f32 %v141, %v147
      %153 = vst.msk [vmem:[#allocation3] sm:$0xff] %vm130, %v149
      %154 = vst.msk [vmem:[#allocation3 + $0x8] sm:$0xff] %vm130, %v150
      %155 = vst.msk [vmem:[#allocation3 + $0x10] sm:$0xff] %vm130, %v151
      %156 = vst.msk [vmem:[#allocation3 + $0x18] sm:$0xff] %vm130, %v152
    $region21: #{sharable_attention.5} parent=1 // pred_fallthru
      _
    // Predicated region
    $region22: #{sharable_attention.5} parent=1 // pred_check
      _
    $region23: #{sharable_attention.5} parent=1 // pred_check_branch
      %158 = sbr.rel (0) target = $region25
    $region24: #{sharable_attention.5} parent=1 // pred_region
      %s160 = ssub.s32 512, 512
      %161 = vsyncadd [#allocation4], %s160
      %s162 = sshll.u32 [#allocation3], 4
      %s163 = int_to_ptr.vmem [resolvable:$true] %s162
      %168 = dma.vmem_to_hbm [thread:$0]  %s163, 512, %s3, [#allocation4], 128, 128, 8
    $region25: #{sharable_attention.5} parent=1 // pred_fallthru
      _
    // Predicated region
    $region26: #{sharable_attention.5} parent=1 // pred_check
      _
    $region27: #{sharable_attention.5} parent=1 // pred_check_branch
      %170 = sbr.rel (0) target = $region29
    $region28: #{sharable_attention.5} parent=1 // pred_region
      %171 = dma.done [#allocation4], 512
    $region29: #{sharable_attention.5} parent=1 // pred_fallthru
      _
    %172 = vsyncpa [#allocation4], 1

// kernel: sharable_attention.4
$region0: #{sharable_attention.4}
  #allocation0 [shape = 'u32[]', space=smem, size = 0x4, offset = 0x4, fixed_abs, tag = 'smem constant byte address 0x4 - core index']
  #allocation1 [shape = 'u32[144,128]{1,0:T(1,128)}', space=vmem, size = 0x12000, scoped, tag = 'internal scratch']
  #allocation2 [shape = 'f32[1,16,1]{2,1,0:T(8,128)}', space=vmem, size = 0x2000, scoped, tag = 'scratch operand']
  #allocation3 [shape = 'f32[1,16,1]{2,1,0:T(8,128)}', space=vmem, size = 0x2000, scoped, tag = 'scratch operand']
  #allocation4 [shape = 'f32[1,16,64]{2,1,0:T(8,128)}', space=vmem, size = 0x2000, scoped, tag = 'scratch operand']
  %s0 = inlined_call_operand.vmem [shape: bf16[8,16,64], index: 0, kind: input, shape index: {}]
  %s1 = inlined_call_operand.vmem [shape: bf16[8,16,64], index: 1, kind: input, shape index: {}]
  %s2 = inlined_call_operand.vmem [shape: bf16[8,16,64], index: 2, kind: input, shape index: {}]
  %s3 = inlined_call_operand.vmem [shape: bf16[8,16,64], index: 3, kind: output, shape index: {}]
  %s4 = sld [smem:[#allocation0]]
  $region53: #{sharable_attention.4} parent=0
    _
  %s6 = ssub.s32 1, %s4
  %s7 = scalar_select 0, %s6, %s4
  loop: start=0, step=1, limit=10
  $region2: #{sharable_attention.4} parent=0 // loop_pre_header
    _
  $region3: #{sharable_attention.4} parent=0 // loop_header
    %s9 = sphi 0, %s13
    %p10 = scmp.ge.s32.totalorder %s9, 10
    %s16 = sphi 0, %s35
    %s17 = sphi 0, %s31
    %s18 = sphi 0, %s27
    %s19 = sphi 0, %s16
    %s20 = sphi 0, %s17
    %s21 = sphi 0, %s18
    %s22 = sphi 0, %s19
    %s23 = sphi 0, %s20
    %s24 = sphi 0, %s21
    %s40 = sphi 0, %s42
    %s43 = sphi 0, %s40
    %s44 = sphi 0, %s43
    %s60 = sphi 0, %s44
    %s68 = sphi 0, %s70
    %s71 = sphi 0, %s68
    %s72 = sphi 0, %s71
    %s88 = sphi 0, %s72
    %s96 = sphi 0, %s98
    %s99 = sphi 0, %s96
    %s100 = sphi 0, %s99
    %s116 = sphi 0, %s100
    %s124 = sphi 0, %s126
    %s127 = sphi 0, %s124
    %s128 = sphi 0, %s127
    %s144 = sphi 0, %s128
  $region4: #{sharable_attention.4} parent=0 // loop_header_branch
    %12 = sbr.rel (%p10) target = $region8
  $region5: #{sharable_attention.4} parent=0 // loop_body
    %s14 = ssub.s32 %s9, 1
    %s15 = ssub.s32 %s9, 2
    %s25 = sadd.s32 1, %s18
    %p26 = scmp.ge.s32.totalorder %s25, 1
    %s27 = scalar_select %p26, 0, %s25
    %s28 = sadd.s32 1, %s17
    %s29 = scalar_select %p26, %s28, %s17
    %p30 = scmp.ge.s32.totalorder %s29, 1
    %s31 = scalar_select %p30, 0, %s29
    %s32 = sadd.s32 1, %s16
    %s33 = scalar_select %p30, %s32, %s16
    %p34 = scmp.ge.s32.totalorder %s33, 8
    %s35 = scalar_select %p34, 0, %s33
    %s36 = ssub.s32 %s16, %s35
    %s37 = ssub.s32 %s17, %s31
    %s38 = sor.u32 %s36, %s37
    %p39 = scmp.eq.s32.totalorder %s38, 0
    %s41 = sadd.s32 %s40, 1
    %s42 = scalar_select %p39, %s40, %s41
    %p45 = pneg %p39
    %p46 = scmp.eq.s32.totalorder %s9, 7
    %p47 = por %p45, %p46
    %p48 = scmp.ne.s32.totalorder %s40, %s43
    %p49 = scmp.eq.s32.totalorder %s9, 0
    %p50 = por %p48, %p49
    %p51 = scmp.ne.s32.totalorder %s40, %s43
    %p52 = scmp.eq.s32.totalorder %s14, 7
    %p53 = por %p51, %p52
    %p54 = scmp.ne.s32.totalorder %s43, %s44
    %p55 = scmp.eq.s32.totalorder %s14, 0
    %p56 = por %p54, %p55
    %p57 = scmp.ne.s32.totalorder %s43, %s44
    %p58 = scmp.eq.s32.totalorder %s15, 7
    %p59 = por %p57, %p58
    %p61 = scmp.ne.s32.totalorder %s44, %s60
    %p62 = scmp.eq.s32.totalorder %s15, 0
    %p63 = por %p61, %p62
    %s64 = ssub.s32 %s16, %s35
    %s65 = ssub.s32 %s18, %s27
    %s66 = sor.u32 %s64, %s65
    %p67 = scmp.eq.s32.totalorder %s66, 0
    %s69 = sadd.s32 %s68, 1
    %s70 = scalar_select %p67, %s68, %s69
    %p73 = pneg %p67
    %p74 = scmp.eq.s32.totalorder %s9, 7
    %p75 = por %p73, %p74
    %p76 = scmp.ne.s32.totalorder %s68, %s71
    %p77 = scmp.eq.s32.totalorder %s9, 0
    %p78 = por %p76, %p77
    %p79 = scmp.ne.s32.totalorder %s68, %s71
    %p80 = scmp.eq.s32.totalorder %s14, 7
    %p81 = por %p79, %p80
    %p82 = scmp.ne.s32.totalorder %s71, %s72
    %p83 = scmp.eq.s32.totalorder %s14, 0
    %p84 = por %p82, %p83
    %p85 = scmp.ne.s32.totalorder %s71, %s72
    %p86 = scmp.eq.s32.totalorder %s15, 7
    %p87 = por %p85, %p86
    %p89 = scmp.ne.s32.totalorder %s72, %s88
    %p90 = scmp.eq.s32.totalorder %s15, 0
    %p91 = por %p89, %p90
    %s92 = ssub.s32 %s16, %s35
    %s93 = ssub.s32 %s18, %s27
    %s94 = sor.u32 %s92, %s93
    %p95 = scmp.eq.s32.totalorder %s94, 0
    %s97 = sadd.s32 %s96, 1
    %s98 = scalar_select %p95, %s96, %s97
    %p101 = pneg %p95
    %p102 = scmp.eq.s32.totalorder %s9, 7
    %p103 = por %p101, %p102
    %p104 = scmp.ne.s32.totalorder %s96, %s99
    %p105 = scmp.eq.s32.totalorder %s9, 0
    %p106 = por %p104, %p105
    %p107 = scmp.ne.s32.totalorder %s96, %s99
    %p108 = scmp.eq.s32.totalorder %s14, 7
    %p109 = por %p107, %p108
    %p110 = scmp.ne.s32.totalorder %s99, %s100
    %p111 = scmp.eq.s32.totalorder %s14, 0
    %p112 = por %p110, %p111
    %p113 = scmp.ne.s32.totalorder %s99, %s100
    %p114 = scmp.eq.s32.totalorder %s15, 7
    %p115 = por %p113, %p114
    %p117 = scmp.ne.s32.totalorder %s100, %s116
    %p118 = scmp.eq.s32.totalorder %s15, 0
    %p119 = por %p117, %p118
    %s120 = ssub.s32 %s16, %s35
    %s121 = ssub.s32 %s17, %s31
    %s122 = sor.u32 %s120, %s121
    %p123 = scmp.eq.s32.totalorder %s122, 0
    %s125 = sadd.s32 %s124, 1
    %s126 = scalar_select %p123, %s124, %s125
    %p129 = pneg %p123
    %p130 = scmp.eq.s32.totalorder %s9, 7
    %p131 = por %p129, %p130
    %p132 = scmp.ne.s32.totalorder %s124, %s127
    %p133 = scmp.eq.s32.totalorder %s9, 0
    %p134 = por %p132, %p133
    %p135 = scmp.ne.s32.totalorder %s124, %s127
    %p136 = scmp.eq.s32.totalorder %s14, 7
    %p137 = por %p135, %p136
    %p138 = scmp.ne.s32.totalorder %s127, %s128
    %p139 = scmp.eq.s32.totalorder %s14, 0
    %p140 = por %p138, %p139
    %p141 = scmp.ne.s32.totalorder %s127, %s128
    %p142 = scmp.eq.s32.totalorder %s15, 7
    %p143 = por %p141, %p142
    %p145 = scmp.ne.s32.totalorder %s128, %s144
    %p146 = scmp.eq.s32.totalorder %s15, 0
    %p147 = por %p145, %p146
    %p148 = scmp.le.s32.totalorder 1, %s9
    %p149 = scmp.lt.s32.totalorder %s9, 9
    %p150 = pnand %p148, %p149
    %p151 = pneg %p150
    // Predicated region
    $region9: #{sharable_attention.4} parent=5 // pred_check
      _
    $region10: #{sharable_attention.4} parent=5 // pred_check_branch
      %153 = sbr.rel (%p150) target = $region12
    $region11: #{sharable_attention.4} parent=5 // pred_region
      %s154 = ssub.s32 %s9, 1
    $region12: #{sharable_attention.4} parent=5 // pred_fallthru
      _
    %p155 = scmp.lt.s32.totalorder %s9, 8
    // Predicated region
    $region13: #{sharable_attention.4} parent=5 // pred_check
      %p156 = pneg %p155
    $region14: #{sharable_attention.4} parent=5 // pred_check_branch
      %158 = sbr.rel (%p156) target = $region16
    $region15: #{sharable_attention.4} parent=5 // pred_region
      // Predicated region
      $region17: #{sharable_attention.4} parent=15 // pred_check
        %p159 = pneg %p50
      $region18: #{sharable_attention.4} parent=15 // pred_check_branch
        %161 = sbr.rel (%p159) target = $region20
      $region19: #{sharable_attention.4} parent=15 // pred_region
        %s162 = smul.u32 2, %s17
        %p163 = scmp.lt.s32.totalorder %s16, 7
        %s164 = scalar_select %p163, %s16, 7
        %p165 = scmp.lt.s32.totalorder %s162, 1
        %s166 = scalar_select %p165, %s162, 1
        %s167 = smul.addr %s164, 2
        %s168 = sadd.s32 %s166, %s167
        %s169 = smul.addr %s168, 4
        %s170 = scalar_lea.vmem %s0, %s169
        %s171 = smul.u32 2, %s17
      $region20: #{sharable_attention.4} parent=15 // pred_fallthru
        _
      // Predicated region
      $region21: #{sharable_attention.4} parent=15 // pred_check
        %p172 = pneg %p78
      $region22: #{sharable_attention.4} parent=15 // pred_check_branch
        %174 = sbr.rel (%p172) target = $region24
      $region23: #{sharable_attention.4} parent=15 // pred_region
        %s175 = smul.u32 2, %s18
        %p176 = scmp.lt.s32.totalorder %s16, 7
        %s177 = scalar_select %p176, %s16, 7
        %p178 = scmp.lt.s32.totalorder %s175, 1
        %s179 = scalar_select %p178, %s175, 1
        %s180 = smul.addr %s177, 2
        %s181 = sadd.s32 %s179, %s180
        %s182 = smul.addr %s181, 4
        %s183 = scalar_lea.vmem %s1, %s182
        %s184 = smul.u32 2, %s18
      $region24: #{sharable_attention.4} parent=15 // pred_fallthru
        _
      // Predicated region
      $region25: #{sharable_attention.4} parent=15 // pred_check
        %p185 = pneg %p106
      $region26: #{sharable_attention.4} parent=15 // pred_check_branch
        %187 = sbr.rel (%p185) target = $region28
      $region27: #{sharable_attention.4} parent=15 // pred_region
        %s188 = smul.u32 2, %s18
        %p189 = scmp.lt.s32.totalorder %s16, 7
        %s190 = scalar_select %p189, %s16, 7
        %p191 = scmp.lt.s32.totalorder %s188, 1
        %s192 = scalar_select %p191, %s188, 1
        %s193 = smul.addr %s190, 2
        %s194 = sadd.s32 %s192, %s193
        %s195 = smul.addr %s194, 4
        %s196 = scalar_lea.vmem %s2, %s195
        %s197 = smul.u32 2, %s18
      $region28: #{sharable_attention.4} parent=15 // pred_fallthru
        _
    $region16: #{sharable_attention.4} parent=5 // pred_fallthru
      _
    %p198 = scmp.le.s32.totalorder 1, %s9
    %p199 = scmp.lt.s32.totalorder %s9, 9
    %p200 = pnand %p198, %p199
    %p201 = pneg %p200
    // Predicated region
    $region29: #{sharable_attention.4} parent=5 // pred_check
      _
    $region30: #{sharable_attention.4} parent=5 // pred_check_branch
      %203 = sbr.rel (%p200) target = $region32
    $region31: #{sharable_attention.4} parent=5 // pred_region
      %s204 = ssub.s32 %s9, 1
      %s205 = smul.u32 2, %s20
      %p206 = scmp.lt.s32.totalorder %s19, 7
      %s207 = scalar_select %p206, %s19, 7
      %p208 = scmp.lt.s32.totalorder %s205, 1
      %s209 = scalar_select %p208, %s205, 1
      %s210 = smul.addr %s207, 2
      %s211 = sadd.s32 %s209, %s210
      %s212 = smul.addr %s211, 4
      %s213 = scalar_lea.vmem %s0, %s212
      %p214 = pneg %p56
      %p215 = pneg %p53
      %s216 = smul.u32 2, %s21
      %p217 = scmp.lt.s32.totalorder %s19, 7
      %s218 = scalar_select %p217, %s19, 7
      %p219 = scmp.lt.s32.totalorder %s216, 1
      %s220 = scalar_select %p219, %s216, 1
      %s221 = smul.addr %s218, 2
      %s222 = sadd.s32 %s220, %s221
      %s223 = smul.addr %s222, 4
      %s224 = scalar_lea.vmem %s1, %s223
      %p225 = pneg %p84
      %p226 = pneg %p81
      %s227 = smul.u32 2, %s21
      %p228 = scmp.lt.s32.totalorder %s19, 7
      %s229 = scalar_select %p228, %s19, 7
      %p230 = scmp.lt.s32.totalorder %s227, 1
      %s231 = scalar_select %p230, %s227, 1
      %s232 = smul.addr %s229, 2
      %s233 = sadd.s32 %s231, %s232
      %s234 = smul.addr %s233, 4
      %s235 = scalar_lea.vmem %s2, %s234
      %p236 = pneg %p112
      %p237 = pneg %p109
      %p238 = pneg %p140
      %p239 = pneg %p137
      %s240 = smul.u32 2, %s20
      %p241 = scmp.lt.s32.totalorder %s19, 7
      %s242 = scalar_select %p241, %s19, 7
      %p243 = scmp.lt.s32.totalorder %s240, 1
      %s244 = scalar_select %p243, %s240, 1
      %s245 = smul.addr %s242, 2
      %s246 = sadd.s32 %s244, %s245
      %s247 = smul.addr %s246, 4
      %s248 = scalar_lea.vmem %s3, %s247
      %s249 = smul.u32 2, %s20
      %p250 = scmp.lt.s32.totalorder %s19, 7
      %s251 = scalar_select %p250, %s19, 7
      %p252 = scmp.lt.s32.totalorder %s249, 1
      %s253 = scalar_select %p252, %s249, 1
      %s254 = smul.addr %s251, 2
      %s255 = sadd.s32 %s253, %s254
      %s256 = smul.addr %s255, 4
      %s257 = scalar_lea.vmem %s0, %s256
      %s258 = smul.u32 2, %s20
      %s259 = smul.u32 2, %s21
      %p260 = scmp.lt.s32.totalorder %s19, 7
      %s261 = scalar_select %p260, %s19, 7
      %p262 = scmp.lt.s32.totalorder %s259, 1
      %s263 = scalar_select %p262, %s259, 1
      %s264 = smul.addr %s261, 2
      %s265 = sadd.s32 %s263, %s264
      %s266 = smul.addr %s265, 4
      %s267 = scalar_lea.vmem %s1, %s266
      %s268 = smul.u32 2, %s21
      %s269 = smul.u32 2, %s21
      %p270 = scmp.lt.s32.totalorder %s19, 7
      %s271 = scalar_select %p270, %s19, 7
      %p272 = scmp.lt.s32.totalorder %s269, 1
      %s273 = scalar_select %p272, %s269, 1
      %s274 = smul.addr %s271, 2
      %s275 = sadd.s32 %s273, %s274
      %s276 = smul.addr %s275, 4
      %s277 = scalar_lea.vmem %s2, %s276
      %s278 = smul.u32 2, %s21
      %s279 = smul.u32 2, %s20
      %p280 = scmp.lt.s32.totalorder %s19, 7
      %s281 = scalar_select %p280, %s19, 7
      %p282 = scmp.lt.s32.totalorder %s279, 1
      %s283 = scalar_select %p282, %s279, 1
      %s284 = smul.addr %s281, 2
      %s285 = sadd.s32 %s283, %s284
      %s286 = smul.addr %s285, 4
      %s287 = scalar_lea.vmem %s3, %s286
      %s288 = smul.u32 2, %s20
      %p290 = scmp.eq.s32.totalorder %s21, 0
      // Predicated region
      $region33: #{sharable_attention.4} parent=31 // pred_check
        %p291 = pneg %p290
      $region34: #{sharable_attention.4} parent=31 // pred_check_branch
        %293 = sbr.rel (%p291) target = $region36
      $region35: #{sharable_attention.4} parent=31 // pred_region
        %vm294 = vcmask 7168
        %295 = vst.msk [vmem:[#allocation2] sm:$0xff] %vm294, -inf
        %296 = vst.msk [vmem:[#allocation2 + $0x8] sm:$0xff] %vm294, -inf
        %297 = vst.msk [vmem:[#allocation3] sm:$0xff] %vm294, 0.0
        %298 = vst.msk [vmem:[#allocation3 + $0x8] sm:$0xff] %vm294, 0.0
        %vm299 = vcmask 523264
        %300 = vst.msk [vmem:[#allocation4] sm:$0xff] %vm299, 0.0
        %301 = vst.msk [vmem:[#allocation4 + $0x8] sm:$0xff] %vm299, 0.0
      $region36: #{sharable_attention.4} parent=31 // pred_fallthru
        _
      %v302 = vld [vmem:[%s257] sm:$0xf]
      %v303 = vld [vmem:[%s257 + $0x4] sm:$0xf]
      %v304 = vld [vmem:[%s267] sm:$0xf]
      %v305 = vld [vmem:[%s267 + $0x4] sm:$0xf]
      %v308 = vunpack.c.l.b16 %v302
      %v309 = vunpack.c.l.b16 %v303
      %v310 = vpack.c.b16 %v309, %v308
      %v313 = vunpack.c.l.b16 %v304
      %v314 = vunpack.c.l.b16 %v305
      %v315 = vpack.c.b16 %v314, %v313
      %vm316 = vcmask 523264
      %v318 = vsel %vm316, %v310, 0
      %v321 = vsel %vm316, %v315, 0
      %323 = vmatprep.subr.bf16.mxu0 0
      %324 = vmatpush1.bf16.xpose.msra.mxu0 %v321
      %325 = vmatprep.subr.bf16.mxu0 0
      %326 = vmatpush1.bf16.xpose.msra.mxu0 0
      %327 = vmatprep.subr.bf16.mxu0 0
      %328 = vmatpush1.bf16.xpose.msra.mxu0 0
      %329 = vmatprep.subr.bf16.mxu0 0
      %330 = vmatpush1.bf16.xpose.msra.mxu0 0
      %331 = vmatprep.subr.bf16.mxu0 0
      %332 = vmatpush1.bf16.xpose.msra.mxu0 0
      %333 = vmatprep.subr.bf16.mxu0 0
      %334 = vmatpush1.bf16.xpose.msra.mxu0 0
      %335 = vmatprep.subr.bf16.mxu0 0
      %336 = vmatpush1.bf16.xpose.msra.mxu0 0
      %337 = vmatprep.subr.bf16.mxu0 0
      %338 = vmatpush1.bf16.xpose.msra.mxu0 0
      %339 = vmatprep.subr.bf16.mxu0 0
      %340 = vmatpush1.bf16.xpose.msra.mxu0 0
      %341 = vmatprep.subr.bf16.mxu0 0
      %342 = vmatpush1.bf16.xpose.msra.mxu0 0
      %343 = vmatprep.subr.bf16.mxu0 0
      %344 = vmatpush1.bf16.xpose.msra.mxu0 0
      %345 = vmatprep.subr.bf16.mxu0 0
      %346 = vmatpush1.bf16.xpose.msra.mxu0 0
      %347 = vmatprep.subr.bf16.mxu0 0
      %348 = vmatpush1.bf16.xpose.msra.mxu0 0
      %349 = vmatprep.subr.bf16.mxu0 0
      %350 = vmatpush1.bf16.xpose.msra.mxu0 0
      %351 = vmatprep.subr.bf16.mxu0 0
      %352 = vmatpush1.bf16.xpose.msra.mxu0 0
      %353 = vmatprep.subr.bf16.mxu0 0
      %354 = vmatpush1.bf16.xpose.msra.mxu0 0
      %355 = vmatprep.mubr.bf16.mxu0 0
      %356 = vmatmul.mubr.bf16.gmra.mrb[0].mxu0 %v318
      %v357 = vpop.f32.mrb[0].mxu0
      %v358 = vadd.f32 0.0, %v357
      %v359 = vpop.f32.mrb[0].mxu0
      %v360 = vpop.f32.mrb[0].mxu0
      %v361 = vadd.f32 0.0, %v360
      %v362 = vpop.f32.mrb[0].mxu0
      %363 = vdwg.mxu0
      %v364 = vmul.f32 %v358, 0.125
      %v365 = vmul.f32 %v361, 0.125
      %v366 = vld [vmem:[#allocation2] sm:$0xff]
      %v367 = vld [vmem:[#allocation2 + $0x8] sm:$0xff]
      %vm368 = vcmask 130048
      %v369 = vsel %vm368, %v364, -inf
      %370 = vmax.xlane.f32.xlu0 %v369
      %v371 = vpop.xlane.xlu0 %370
      %v372 = vsel %vm368, %v365, -inf
      %373 = vmax.xlane.f32.xlu0 %v372
      %v374 = vpop.xlane.xlu0 %373
      %v375 = vmax.f32 %v366, %v371
      %v376 = vmax.f32 %v367, %v374
      %v377 = vsub.f32 %v366, %v375
      %v378 = vsub.f32 %v367, %v376
      %v379 = vmul.f32 %v377, 1.442695
      %v380 = vpow.pop %v379
      %v381 = vmul.f32 %v378, 1.442695
      %v382 = vpow.pop %v381
      %384 = vset.pattern.permute.xlu0 0
      %385 = vperm.xlu0 %384, %v375
      %v386 = vpop.permute.xlu0 %385
      %389 = vset.pattern.permute.xlu0 0
      %390 = vperm.xlu0 %389, %v376
      %v391 = vpop.permute.xlu0 %390
      %v393 = vsub.f32 %v364, %v386
      %v394 = vsub.f32 %v365, %v391
      %v395 = vmul.f32 %v393, 1.442695
      %v396 = vpow.pop %v395
      %v397 = vmul.f32 %v394, 1.442695
      %v398 = vpow.pop %v397
      %v399 = vld [vmem:[#allocation3] sm:$0xff]
      %v400 = vld [vmem:[#allocation3 + $0x8] sm:$0xff]
      %v401 = vmul.f32 %v380, %v399
      %v402 = vmul.f32 %v382, %v400
      %v403 = vsel %vm368, %v396, 0.0
      %404 = vadd.xlane.f32.xlu0 %v403
      %v405 = vpop.xlane.xlu0 %404
      %v406 = vsel %vm368, %v398, 0.0
      %407 = vadd.xlane.f32.xlu0 %v406
      %v408 = vpop.xlane.xlu0 %407
      %v409 = vadd.f32 %v401, %v405
      %v410 = vadd.f32 %v402, %v408
      %vm411 = vcmask 7168
      %412 = vst.msk [vmem:[#allocation3] sm:$0xff] %vm411, %v409
      %413 = vst.msk [vmem:[#allocation3 + $0x8] sm:$0xff] %vm411, %v410
      %v414 = vld [vmem:[#allocation4] sm:$0xff]
      %v415 = vld [vmem:[#allocation4 + $0x8] sm:$0xff]
      %417 = vset.pattern.permute.xlu0 0
      %418 = vperm.xlu0 %417, %v380
      %v419 = vpop.permute.xlu0 %418
      %422 = vset.pattern.permute.xlu0 0
      %423 = vperm.xlu0 %422, %v382
      %v424 = vpop.permute.xlu0 %423
      %v426 = vmul.f32 %v419, %v414
      %v427 = vmul.f32 %v424, %v415
      %v428 = vpack.c.bf16 %v398, %v396
      %v429 = vld [vmem:[%s277] sm:$0xf]
      %v430 = vld [vmem:[%s277 + $0x4] sm:$0xf]
      %v433 = vunpack.c.l.b16 %v429
      %v434 = vunpack.c.l.b16 %v430
      %v435 = vpack.c.b16 %v434, %v433
      %v438 = vsel %vm368, %v428, 0
      %440 = vmatprep.subr.bf16.mxu0 0
      %441 = vmatpush1.bf16.msra.mxu0 %v435
      %442 = vmatprep.subr.bf16.mxu0 0
      %443 = vmatpush1.bf16.msra.mxu0 0
      %444 = vmatprep.subr.bf16.mxu0 0
      %445 = vmatpush1.bf16.msra.mxu0 0
      %446 = vmatprep.subr.bf16.mxu0 0
      %447 = vmatpush1.bf16.msra.mxu0 0
      %448 = vmatprep.subr.bf16.mxu0 0
      %449 = vmatpush1.bf16.msra.mxu0 0
      %450 = vmatprep.subr.bf16.mxu0 0
      %451 = vmatpush1.bf16.msra.mxu0 0
      %452 = vmatprep.subr.bf16.mxu0 0
      %453 = vmatpush1.bf16.msra.mxu0 0
      %454 = vmatprep.subr.bf16.mxu0 0
      %455 = vmatpush1.bf16.msra.mxu0 0
      %456 = vmatprep.subr.bf16.mxu0 0
      %457 = vmatpush1.bf16.msra.mxu0 0
      %458 = vmatprep.subr.bf16.mxu0 0
      %459 = vmatpush1.bf16.msra.mxu0 0
      %460 = vmatprep.subr.bf16.mxu0 0
      %461 = vmatpush1.bf16.msra.mxu0 0
      %462 = vmatprep.subr.bf16.mxu0 0
      %463 = vmatpush1.bf16.msra.mxu0 0
      %464 = vmatprep.subr.bf16.mxu0 0
      %465 = vmatpush1.bf16.msra.mxu0 0
      %466 = vmatprep.subr.bf16.mxu0 0
      %467 = vmatpush1.bf16.msra.mxu0 0
      %468 = vmatprep.subr.bf16.mxu0 0
      %469 = vmatpush1.bf16.msra.mxu0 0
      %470 = vmatprep.subr.bf16.mxu0 0
      %471 = vmatpush1.bf16.msra.mxu0 0
      %472 = vmatprep.mubr.bf16.mxu0 0
      %473 = vmatmul.mubr.bf16.gmra.mrb[0].mxu0 %v438
      %v474 = vpop.f32.mrb[0].mxu0
      %v475 = vadd.f32 0.0, %v474
      %v476 = vpop.f32.mrb[0].mxu0
      %v477 = vpop.f32.mrb[0].mxu0
      %v478 = vadd.f32 0.0, %v477
      %v479 = vpop.f32.mrb[0].mxu0
      %480 = vdwg.mxu0
      %v481 = vadd.f32 %v426, %v475
      %v482 = vadd.f32 %v427, %v478
      %483 = vst.msk [vmem:[#allocation4] sm:$0xff] %vm316, %v481
      %484 = vst.msk [vmem:[#allocation4 + $0x8] sm:$0xff] %vm316, %v482
      %485 = vst.msk [vmem:[#allocation2] sm:$0xff] %vm411, %v375
      %486 = vst.msk [vmem:[#allocation2 + $0x8] sm:$0xff] %vm411, %v376
      // Predicated region
      $region37: #{sharable_attention.4} parent=31 // pred_check
        %p487 = pneg %p290
      $region38: #{sharable_attention.4} parent=31 // pred_check_branch
        %489 = sbr.rel (%p487) target = $region40
      $region39: #{sharable_attention.4} parent=31 // pred_region
        %v490 = vld [vmem:[#allocation4] sm:$0xff]
        %v491 = vld [vmem:[#allocation4 + $0x8] sm:$0xff]
        %v492 = vld [vmem:[#allocation3] sm:$0xff]
        %v493 = vld [vmem:[#allocation3 + $0x8] sm:$0xff]
        %v494 = vrcp.pop %v492
        %v495 = vrcp.pop %v493
        %497 = vset.pattern.permute.xlu0 0
        %498 = vperm.xlu0 %497, %v494
        %v499 = vpop.permute.xlu0 %498
        %502 = vset.pattern.permute.xlu0 0
        %503 = vperm.xlu0 %502, %v495
        %v504 = vpop.permute.xlu0 %503
        %v506 = vmul.f32 %v490, %v499
        %v507 = vmul.f32 %v491, %v504
        %v508 = vpack.c.bf16 %v507, %v506
        %v510 = vunpack.c.l.b16 %v508
        %v511 = vunpack.c.h.b16 %v508
        %v512 = vpack.c.b16 %v510, %v510
        %v513 = vpack.c.b16 %v511, %v511
        %vm516 = vcmask 519168
        %517 = vst.msk [vmem:[%s287] sm:$0xf] %vm516, %v512
        %518 = vst.msk [vmem:[%s287 + $0x4] sm:$0xf] %vm516, %v513
      $region40: #{sharable_attention.4} parent=31 // pred_fallthru
        _
      %s519 = smul.u32 2, %s20
      %p520 = scmp.lt.s32.totalorder %s19, 7
      %s521 = scalar_select %p520, %s19, 7
      %p522 = scmp.lt.s32.totalorder %s519, 1
      %s523 = scalar_select %p522, %s519, 1
      %s524 = smul.addr %s521, 2
      %s525 = sadd.s32 %s523, %s524
      %s526 = smul.addr %s525, 4
      %s527 = scalar_lea.vmem %s3, %s526
      // Predicated region
      $region41: #{sharable_attention.4} parent=31 // pred_check
        %p528 = pneg %p137
      $region42: #{sharable_attention.4} parent=31 // pred_check_branch
        %530 = sbr.rel (%p528) target = $region44
      $region43: #{sharable_attention.4} parent=31 // pred_region
        %s531 = smul.u32 2, %s20
      $region44: #{sharable_attention.4} parent=31 // pred_fallthru
        _
    $region32: #{sharable_attention.4} parent=5 // pred_fallthru
      _
    %p532 = scmp.le.s32.totalorder 2, %s9
    // Predicated region
    $region45: #{sharable_attention.4} parent=5 // pred_check
      %p533 = pneg %p532
    $region46: #{sharable_attention.4} parent=5 // pred_check_branch
      %535 = sbr.rel (%p533) target = $region48
    $region47: #{sharable_attention.4} parent=5 // pred_region
      %s536 = ssub.s32 %s9, 2
      // Predicated region
      $region49: #{sharable_attention.4} parent=47 // pred_check
        %p537 = pneg %p143
      $region50: #{sharable_attention.4} parent=47 // pred_check_branch
        %539 = sbr.rel (%p537) target = $region52
      $region51: #{sharable_attention.4} parent=47 // pred_region
        %s540 = smul.u32 2, %s23
        %p541 = scmp.lt.s32.totalorder %s22, 7
        %s542 = scalar_select %p541, %s22, 7
        %p543 = scmp.lt.s32.totalorder %s540, 1
        %s544 = scalar_select %p543, %s540, 1
        %s545 = smul.addr %s542, 2
        %s546 = sadd.s32 %s544, %s545
        %s547 = smul.addr %s546, 4
        %s548 = scalar_lea.vmem %s3, %s547
      $region52: #{sharable_attention.4} parent=47 // pred_fallthru
        _
    $region48: #{sharable_attention.4} parent=5 // pred_fallthru
      _
  $region6: #{sharable_attention.4} parent=0 // loop_footer
    %s13 = sadd.s32 1, %s9
  $region7: #{sharable_attention.4} parent=0 // loop_footer_branch
    %8 = sbr.rel target = $region3
  $region8: #{sharable_attention.4} parent=0 // loop_exit
    _

// kernel: sharable_attention.3
$region0: #{sharable_attention.3}
  #allocation0 [shape = 'u32[]', space=smem, size = 0x4, offset = 0x4, fixed_abs, tag = 'smem constant byte address 0x4 - core index']
  #allocation1 [shape = 'u32[144,128]{1,0:T(1,128)}', space=vmem, size = 0x12000, scoped, tag = 'internal scratch']
  #allocation2 [shape = 'f32[32,256]{1,0:T(8,128)}', space=vmem, size = 0x8000, scoped, tag = 'scratch operand']
  %s0 = inlined_call_operand.vmem [shape: bf16[32,32], index: 0, kind: input, shape index: {}]
  %s1 = inlined_call_operand.vmem [shape: bf16[768,32], index: 1, kind: input, shape index: {}]
  %s2 = inlined_call_operand.vmem [shape: bf16[32,768], index: 2, kind: output, shape index: {}]
  %s3 = sld [smem:[#allocation0]]
  $region83: #{sharable_attention.3} parent=0
    _
  %s5 = ssub.s32 1, %s3
  %s6 = scalar_select 0, %s5, %s3
  $region1: #{sharable_attention.3} parent=0
    #allocation3 [shape = 'u8[32768]{0}', space=vmem, size = 0x8000, scoped, tag = 'output window, operand 0']
    loop: start=0, step=1, limit=5
    $region2: #{sharable_attention.3} parent=1 // loop_pre_header
      _
    $region3: #{sharable_attention.3} parent=1 // loop_header
      %s8 = sphi 0, %s12
      %p9 = scmp.ge.s32.totalorder %s8, 5
      %s15 = sphi 0, %s34
      %s16 = sphi 0, %s30
      %s17 = sphi 0, %s26
      %s18 = sphi 0, %s15
      %s19 = sphi 0, %s16
      %s20 = sphi 0, %s17
      %s21 = sphi 0, %s18
      %s22 = sphi 0, %s19
      %s23 = sphi 0, %s20
      %s39 = sphi 0, %s41
      %s42 = sphi 0, %s39
      %s43 = sphi 0, %s42
      %s59 = sphi 0, %s43
      %s67 = sphi 0, %s69
      %s70 = sphi 0, %s67
      %s71 = sphi 0, %s70
      %s87 = sphi 0, %s71
      %s95 = sphi 0, %s97
      %s98 = sphi 0, %s95
      %s99 = sphi 0, %s98
      %s115 = sphi 0, %s99
    $region4: #{sharable_attention.3} parent=1 // loop_header_branch
      %11 = sbr.rel (%p9) target = $region8
    $region5: #{sharable_attention.3} parent=1 // loop_body
      %s13 = ssub.s32 %s8, 1
      %s14 = ssub.s32 %s8, 2
      %s24 = sadd.s32 1, %s17
      %p25 = scmp.ge.s32.totalorder %s24, 1
      %s26 = scalar_select %p25, 0, %s24
      %s27 = sadd.s32 1, %s16
      %s28 = scalar_select %p25, %s27, %s16
      %p29 = scmp.ge.s32.totalorder %s28, 3
      %s30 = scalar_select %p29, 0, %s28
      %s31 = sadd.s32 1, %s15
      %s32 = scalar_select %p29, %s31, %s15
      %p33 = scmp.ge.s32.totalorder %s32, 1
      %s34 = scalar_select %p33, 0, %s32
      %s35 = ssub.s32 %s15, %s34
      %s36 = ssub.s32 %s17, %s26
      %s37 = sor.u32 %s35, %s36
      %p38 = scmp.eq.s32.totalorder %s37, 0
      %s40 = sadd.s32 %s39, 1
      %s41 = scalar_select %p38, %s39, %s40
      %p44 = pneg %p38
      %p45 = scmp.eq.s32.totalorder %s8, 2
      %p46 = por %p44, %p45
      %p47 = scmp.ne.s32.totalorder %s39, %s42
      %p48 = scmp.eq.s32.totalorder %s8, 0
      %p49 = por %p47, %p48
      %p50 = scmp.ne.s32.totalorder %s39, %s42
      %p51 = scmp.eq.s32.totalorder %s13, 2
      %p52 = por %p50, %p51
      %p53 = scmp.ne.s32.totalorder %s42, %s43
      %p54 = scmp.eq.s32.totalorder %s13, 0
      %p55 = por %p53, %p54
      %p56 = scmp.ne.s32.totalorder %s42, %s43
      %p57 = scmp.eq.s32.totalorder %s14, 2
      %p58 = por %p56, %p57
      %p60 = scmp.ne.s32.totalorder %s43, %s59
      %p61 = scmp.eq.s32.totalorder %s14, 0
      %p62 = por %p60, %p61
      %s63 = ssub.s32 %s16, %s30
      %s64 = ssub.s32 %s17, %s26
      %s65 = sor.u32 %s63, %s64
      %p66 = scmp.eq.s32.totalorder %s65, 0
      %s68 = sadd.s32 %s67, 1
      %s69 = scalar_select %p66, %s67, %s68
      %p72 = pneg %p66
      %p73 = scmp.eq.s32.totalorder %s8, 2
      %p74 = por %p72, %p73
      %p75 = scmp.ne.s32.totalorder %s67, %s70
      %p76 = scmp.eq.s32.totalorder %s8, 0
      %p77 = por %p75, %p76
      %p78 = scmp.ne.s32.totalorder %s67, %s70
      %p79 = scmp.eq.s32.totalorder %s13, 2
      %p80 = por %p78, %p79
      %p81 = scmp.ne.s32.totalorder %s70, %s71
      %p82 = scmp.eq.s32.totalorder %s13, 0
      %p83 = por %p81, %p82
      %p84 = scmp.ne.s32.totalorder %s70, %s71
      %p85 = scmp.eq.s32.totalorder %s14, 2
      %p86 = por %p84, %p85
      %p88 = scmp.ne.s32.totalorder %s71, %s87
      %p89 = scmp.eq.s32.totalorder %s14, 0
      %p90 = por %p88, %p89
      %s91 = ssub.s32 %s15, %s34
      %s92 = ssub.s32 %s16, %s30
      %s93 = sor.u32 %s91, %s92
      %p94 = scmp.eq.s32.totalorder %s93, 0
      %s96 = sadd.s32 %s95, 1
      %s97 = scalar_select %p94, %s95, %s96
      %p100 = pneg %p94
      %p101 = scmp.eq.s32.totalorder %s8, 2
      %p102 = por %p100, %p101
      %p103 = scmp.ne.s32.totalorder %s95, %s98
      %p104 = scmp.eq.s32.totalorder %s8, 0
      %p105 = por %p103, %p104
      %p106 = scmp.ne.s32.totalorder %s95, %s98
      %p107 = scmp.eq.s32.totalorder %s13, 2
      %p108 = por %p106, %p107
      %p109 = scmp.ne.s32.totalorder %s98, %s99
      %p110 = scmp.eq.s32.totalorder %s13, 0
      %p111 = por %p109, %p110
      %p112 = scmp.ne.s32.totalorder %s98, %s99
      %p113 = scmp.eq.s32.totalorder %s14, 2
      %p114 = por %p112, %p113
      %p116 = scmp.ne.s32.totalorder %s99, %s115
      %p117 = scmp.eq.s32.totalorder %s14, 0
      %p118 = por %p116, %p117
      %p119 = scmp.le.s32.totalorder 1, %s8
      %p120 = scmp.lt.s32.totalorder %s8, 4
      %p121 = pnand %p119, %p120
      %p122 = pneg %p121
      // Predicated region
      $region9: #{sharable_attention.3} parent=5 // pred_check
        _
      $region10: #{sharable_attention.3} parent=5 // pred_check_branch
        %124 = sbr.rel (%p121) target = $region12
      $region11: #{sharable_attention.3} parent=5 // pred_region
        %s125 = ssub.s32 %s8, 1
        // Predicated region
        $region13: #{sharable_attention.3} parent=11 // pred_check
          %p126 = pneg %p55
        $region14: #{sharable_attention.3} parent=11 // pred_check_branch
          %128 = sbr.rel (%p126) target = $region16
        $region15: #{sharable_attention.3} parent=11 // pred_region
          %s129 = smul.u32 4, %s18
          %p130 = scmp.lt.s32.totalorder %s129, 3
          %s131 = scalar_select %p130, %s129, 3
          %p132 = scmp.lt.s32.totalorder %s20, 0
          %s133 = scalar_select %p132, %s20, 0
          %s134 = sadd.s32 %s133, %s131
          %s135 = smul.addr %s134, 4
          %s136 = scalar_lea.vmem %s0, %s135
          %s137 = smul.u32 4, %s18
        $region16: #{sharable_attention.3} parent=11 // pred_fallthru
          _
      $region12: #{sharable_attention.3} parent=5 // pred_fallthru
        _
      %p138 = scmp.lt.s32.totalorder %s8, 3
      // Predicated region
      $region17: #{sharable_attention.3} parent=5 // pred_check
        %p139 = pneg %p138
      $region18: #{sharable_attention.3} parent=5 // pred_check_branch
        %141 = sbr.rel (%p139) target = $region20
      $region19: #{sharable_attention.3} parent=5 // pred_region
        // Predicated region
        $region21: #{sharable_attention.3} parent=19 // pred_check
          %p142 = pneg %p77
        $region22: #{sharable_attention.3} parent=19 // pred_check_branch
          %144 = sbr.rel (%p142) target = $region24
        $region23: #{sharable_attention.3} parent=19 // pred_region
          %s145 = smul.u32 32, %s16
          %p146 = scmp.lt.s32.totalorder %s145, 95
          %s147 = scalar_select %p146, %s145, 95
          %p148 = scmp.lt.s32.totalorder %s17, 0
          %s149 = scalar_select %p148, %s17, 0
          %s150 = sadd.s32 %s149, %s147
          %s151 = smul.addr %s150, 4
          %s152 = scalar_lea.vmem %s1, %s151
          %s153 = smul.u32 32, %s16
        $region24: #{sharable_attention.3} parent=19 // pred_fallthru
          _
      $region20: #{sharable_attention.3} parent=5 // pred_fallthru
        _
      %p154 = scmp.le.s32.totalorder 1, %s8
      %p155 = scmp.lt.s32.totalorder %s8, 4
      %p156 = pnand %p154, %p155
      %p157 = pneg %p156
      // Predicated region
      $region25: #{sharable_attention.3} parent=5 // pred_check
        _
      $region26: #{sharable_attention.3} parent=5 // pred_check_branch
        %159 = sbr.rel (%p156) target = $region28
      $region27: #{sharable_attention.3} parent=5 // pred_region
        %s160 = ssub.s32 %s8, 1
        %s161 = smul.u32 4, %s18
        %p162 = scmp.lt.s32.totalorder %s161, 3
        %s163 = scalar_select %p162, %s161, 3
        %p164 = scmp.lt.s32.totalorder %s20, 0
        %s165 = scalar_select %p164, %s20, 0
        %s166 = sadd.s32 %s165, %s163
        %s167 = smul.addr %s166, 4
        %s168 = scalar_lea.vmem %s0, %s167
        %p169 = pneg %p55
        %p170 = pneg %p52
        %s171 = smul.u32 32, %s19
        %p172 = scmp.lt.s32.totalorder %s171, 95
        %s173 = scalar_select %p172, %s171, 95
        %p174 = scmp.lt.s32.totalorder %s20, 0
        %s175 = scalar_select %p174, %s20, 0
        %s176 = sadd.s32 %s175, %s173
        %s177 = smul.addr %s176, 4
        %s178 = scalar_lea.vmem %s1, %s177
        %p179 = pneg %p83
        %p180 = pneg %p80
        %p181 = pneg %p111
        %p182 = pneg %p108
        %s183 = sand.u32 %s98, 1
        %s184 = sand.u32 %s98, 1
        %s185 = smul.addr %s184, 32
        %s186 = scalar_lea.vmem [#allocation3], %s185
        %s187 = smul.u32 4, %s18
        %p188 = scmp.lt.s32.totalorder %s187, 3
        %s189 = scalar_select %p188, %s187, 3
        %p190 = scmp.lt.s32.totalorder %s20, 0
        %s191 = scalar_select %p190, %s20, 0
        %s192 = sadd.s32 %s191, %s189
        %s193 = smul.addr %s192, 4
        %s194 = scalar_lea.vmem %s0, %s193
        %s195 = smul.u32 4, %s18
        %s196 = smul.u32 32, %s19
        %p197 = scmp.lt.s32.totalorder %s196, 95
        %s198 = scalar_select %p197, %s196, 95
        %p199 = scmp.lt.s32.totalorder %s20, 0
        %s200 = scalar_select %p199, %s20, 0
        %s201 = sadd.s32 %s200, %s198
        %s202 = smul.addr %s201, 4
        %s203 = scalar_lea.vmem %s1, %s202
        %s204 = smul.u32 32, %s19
        %s205 = smul.u32 4, %s18
        %s206 = smul.u32 2, %s19
        %p208 = scmp.eq.s32.totalorder %s20, 0
        // Predicated region
        $region29: #{sharable_attention.3} parent=27 // pred_check
          %p209 = pneg %p208
        $region30: #{sharable_attention.3} parent=27 // pred_check_branch
          %211 = sbr.rel (%p209) target = $region32
        $region31: #{sharable_attention.3} parent=27 // pred_region
          %212 = vst [vmem:[#allocation2] sm:$0xff] 0.0
          %213 = vst [vmem:[#allocation2 + $0x8] sm:$0xff] 0.0
          %214 = vst [vmem:[#allocation2 + $0x10] sm:$0xff] 0.0
          %215 = vst [vmem:[#allocation2 + $0x18] sm:$0xff] 0.0
          %216 = vst [vmem:[#allocation2 + $0x20] sm:$0xff] 0.0
          %217 = vst [vmem:[#allocation2 + $0x28] sm:$0xff] 0.0
          %218 = vst [vmem:[#allocation2 + $0x30] sm:$0xff] 0.0
          %219 = vst [vmem:[#allocation2 + $0x38] sm:$0xff] 0.0
        $region32: #{sharable_attention.3} parent=27 // pred_fallthru
          _
        %v220 = vld [vmem:[#allocation2] sm:$0xff]
        %v221 = vld [vmem:[#allocation2 + $0x8] sm:$0xff]
        %v222 = vld [vmem:[#allocation2 + $0x10] sm:$0xff]
        %v223 = vld [vmem:[#allocation2 + $0x18] sm:$0xff]
        %v224 = vld [vmem:[#allocation2 + $0x20] sm:$0xff]
        %v225 = vld [vmem:[#allocation2 + $0x28] sm:$0xff]
        %v226 = vld [vmem:[#allocation2 + $0x30] sm:$0xff]
        %v227 = vld [vmem:[#allocation2 + $0x38] sm:$0xff]
        %v228 = vld [vmem:[%s194] sm:$0xf]
        %v229 = vld [vmem:[%s194 + $0x4] sm:$0xf]
        %v230 = vld [vmem:[%s194 + $0x8] sm:$0xf]
        %v231 = vld [vmem:[%s194 + $0xc] sm:$0xf]
        %v232 = vld [vmem:[%s203] sm:$0xf]
        %v233 = vld [vmem:[%s203 + $0x4] sm:$0xf]
        %v234 = vld [vmem:[%s203 + $0x8] sm:$0xf]
        %v235 = vld [vmem:[%s203 + $0xc] sm:$0xf]
        %v236 = vld [vmem:[%s203 + $0x10] sm:$0xf]
        %v237 = vld [vmem:[%s203 + $0x14] sm:$0xf]
        %v238 = vld [vmem:[%s203 + $0x18] sm:$0xf]
        %v239 = vld [vmem:[%s203 + $0x1c] sm:$0xf]
        %v240 = vld [vmem:[%s203 + $0x20] sm:$0xf]
        %v241 = vld [vmem:[%s203 + $0x24] sm:$0xf]
        %v242 = vld [vmem:[%s203 + $0x28] sm:$0xf]
        %v243 = vld [vmem:[%s203 + $0x2c] sm:$0xf]
        %v244 = vld [vmem:[%s203 + $0x30] sm:$0xf]
        %v245 = vld [vmem:[%s203 + $0x34] sm:$0xf]
        %v246 = vld [vmem:[%s203 + $0x38] sm:$0xf]
        %v247 = vld [vmem:[%s203 + $0x3c] sm:$0xf]
        %v248 = vld [vmem:[%s203 + $0x40] sm:$0xf]
        %v249 = vld [vmem:[%s203 + $0x44] sm:$0xf]
        %v250 = vld [vmem:[%s203 + $0x48] sm:$0xf]
        %v251 = vld [vmem:[%s203 + $0x4c] sm:$0xf]
        %v252 = vld [vmem:[%s203 + $0x50] sm:$0xf]
        %v253 = vld [vmem:[%s203 + $0x54] sm:$0xf]
        %v254 = vld [vmem:[%s203 + $0x58] sm:$0xf]
        %v255 = vld [vmem:[%s203 + $0x5c] sm:$0xf]
        %v256 = vld [vmem:[%s203 + $0x60] sm:$0xf]
        %v257 = vld [vmem:[%s203 + $0x64] sm:$0xf]
        %v258 = vld [vmem:[%s203 + $0x68] sm:$0xf]
        %v259 = vld [vmem:[%s203 + $0x6c] sm:$0xf]
        %v260 = vld [vmem:[%s203 + $0x70] sm:$0xf]
        %v261 = vld [vmem:[%s203 + $0x74] sm:$0xf]
        %v262 = vld [vmem:[%s203 + $0x78] sm:$0xf]
        %v263 = vld [vmem:[%s203 + $0x7c] sm:$0xf]
        %v268 = vunpack.c.l.b16 %v228
        %v269 = vunpack.c.l.b16 %v229
        %v270 = vunpack.c.l.b16 %v230
        %v271 = vunpack.c.l.b16 %v231
        %v272 = vpack.c.b16 %v269, %v268
        %v273 = vpack.c.b16 %v271, %v270
        %v306 = vunpack.c.l.b16 %v232
        %v307 = vunpack.c.l.b16 %v233
        %v308 = vunpack.c.l.b16 %v234
        %v309 = vunpack.c.l.b16 %v235
        %v310 = vunpack.c.l.b16 %v236
        %v311 = vunpack.c.l.b16 %v237
        %v312 = vunpack.c.l.b16 %v238
        %v313 = vunpack.c.l.b16 %v239
        %v314 = vunpack.c.l.b16 %v240
        %v315 = vunpack.c.l.b16 %v241
        %v316 = vunpack.c.l.b16 %v242
        %v317 = vunpack.c.l.b16 %v243
        %v318 = vunpack.c.l.b16 %v244
        %v319 = vunpack.c.l.b16 %v245
        %v320 = vunpack.c.l.b16 %v246
        %v321 = vunpack.c.l.b16 %v247
        %v322 = vunpack.c.l.b16 %v248
        %v323 = vunpack.c.l.b16 %v249
        %v324 = vunpack.c.l.b16 %v250
        %v325 = vunpack.c.l.b16 %v251
        %v326 = vunpack.c.l.b16 %v252
        %v327 = vunpack.c.l.b16 %v253
        %v328 = vunpack.c.l.b16 %v254
        %v329 = vunpack.c.l.b16 %v255
        %v330 = vunpack.c.l.b16 %v256
        %v331 = vunpack.c.l.b16 %v257
        %v332 = vunpack.c.l.b16 %v258
        %v333 = vunpack.c.l.b16 %v259
        %v334 = vunpack.c.l.b16 %v260
        %v335 = vunpack.c.l.b16 %v261
        %v336 = vunpack.c.l.b16 %v262
        %v337 = vunpack.c.l.b16 %v263
        %v338 = vpack.c.b16 %v307, %v306
        %v339 = vpack.c.b16 %v309, %v308
        %v340 = vpack.c.b16 %v311, %v310
        %v341 = vpack.c.b16 %v313, %v312
        %v342 = vpack.c.b16 %v315, %v314
        %v343 = vpack.c.b16 %v317, %v316
        %v344 = vpack.c.b16 %v319, %v318
        %v345 = vpack.c.b16 %v321, %v320
        %v346 = vpack.c.b16 %v323, %v322
        %v347 = vpack.c.b16 %v325, %v324
        %v348 = vpack.c.b16 %v327, %v326
        %v349 = vpack.c.b16 %v329, %v328
        %v350 = vpack.c.b16 %v331, %v330
        %v351 = vpack.c.b16 %v333, %v332
        %v352 = vpack.c.b16 %v335, %v334
        %v353 = vpack.c.b16 %v337, %v336
        %vm354 = vcmask 261120
        %v356 = vsel %vm354, %v272, 0
        %v359 = vsel %vm354, %v273, 0
        %v362 = vsel %vm354, %v338, 0
        %v365 = vsel %vm354, %v339, 0
        %v368 = vsel %vm354, %v340, 0
        %v371 = vsel %vm354, %v341, 0
        %v374 = vsel %vm354, %v342, 0
        %v377 = vsel %vm354, %v343, 0
        %v380 = vsel %vm354, %v344, 0
        %v383 = vsel %vm354, %v345, 0
        %v386 = vsel %vm354, %v346, 0
        %v389 = vsel %vm354, %v347, 0
        %v392 = vsel %vm354, %v348, 0
        %v395 = vsel %vm354, %v349, 0
        %v398 = vsel %vm354, %v350, 0
        %v401 = vsel %vm354, %v351, 0
        %v404 = vsel %vm354, %v352, 0
        %v407 = vsel %vm354, %v353, 0
        %409 = vmatprep.subr.bf16.mxu0 0
        %410 = vmatpush1.bf16.xpose.msra.mxu0 %v362
        %411 = vmatprep.subr.bf16.mxu0 0
        %412 = vmatpush1.bf16.xpose.msra.mxu0 %v365
        %413 = vmatprep.subr.bf16.mxu0 0
        %414 = vmatpush1.bf16.xpose.msra.mxu0 %v368
        %415 = vmatprep.subr.bf16.mxu0 0
        %416 = vmatpush1.bf16.xpose.msra.mxu0 %v371
        %417 = vmatprep.subr.bf16.mxu0 0
        %418 = vmatpush1.bf16.xpose.msra.mxu0 %v374
        %419 = vmatprep.subr.bf16.mxu0 0
        %420 = vmatpush1.bf16.xpose.msra.mxu0 %v377
        %421 = vmatprep.subr.bf16.mxu0 0
        %422 = vmatpush1.bf16.xpose.msra.mxu0 %v380
        %423 = vmatprep.subr.bf16.mxu0 0
        %424 = vmatpush1.bf16.xpose.msra.mxu0 %v383
        %425 = vmatprep.subr.bf16.mxu0 0
        %426 = vmatpush1.bf16.xpose.msra.mxu0 %v386
        %427 = vmatprep.subr.bf16.mxu0 0
        %428 = vmatpush1.bf16.xpose.msra.mxu0 %v389
        %429 = vmatprep.subr.bf16.mxu0 0
        %430 = vmatpush1.bf16.xpose.msra.mxu0 %v392
        %431 = vmatprep.subr.bf16.mxu0 0
        %432 = vmatpush1.bf16.xpose.msra.mxu0 %v395
        %433 = vmatprep.subr.bf16.mxu0 0
        %434 = vmatpush1.bf16.xpose.msra.mxu0 %v398
        %435 = vmatprep.subr.bf16.mxu0 0
        %436 = vmatpush1.bf16.xpose.msra.mxu0 %v401
        %437 = vmatprep.subr.bf16.mxu0 0
        %438 = vmatpush1.bf16.xpose.msra.mxu0 %v404
        %439 = vmatprep.subr.bf16.mxu0 0
        %440 = vmatpush1.bf16.xpose.msra.mxu0 %v407
        %441 = vmatprep.mubr.bf16.mxu0 0
        %442 = vmatmul.mubr.bf16.gmra.mrb[0].mxu0 %v356
        %v443 = vpop.f32.mrb[0].mxu0
        %v444 = vadd.f32 0.0, %v443
        %v445 = vpop.f32.mrb[0].mxu0
        %v446 = vadd.f32 0.0, %v445
        %v447 = vpop.f32.mrb[0].mxu0
        %v448 = vadd.f32 0.0, %v447
        %v449 = vpop.f32.mrb[0].mxu0
        %v450 = vadd.f32 0.0, %v449
        %451 = vmatprep.mubr.bf16.mxu0 0
        %452 = vmatmul.mubr.bf16.gmra.mrb[0].mxu0 %v359
        %v453 = vpop.f32.mrb[0].mxu0
        %v454 = vadd.f32 0.0, %v453
        %v455 = vpop.f32.mrb[0].mxu0
        %v456 = vadd.f32 0.0, %v455
        %v457 = vpop.f32.mrb[0].mxu0
        %v458 = vadd.f32 0.0, %v457
        %v459 = vpop.f32.mrb[0].mxu0
        %v460 = vadd.f32 0.0, %v459
        %461 = vdwg.mxu0
        %v462 = vadd.f32 %v220, %v444
        %v463 = vadd.f32 %v221, %v446
        %v464 = vadd.f32 %v222, %v448
        %v465 = vadd.f32 %v223, %v450
        %v466 = vadd.f32 %v224, %v454
        %v467 = vadd.f32 %v225, %v456
        %v468 = vadd.f32 %v226, %v458
        %v469 = vadd.f32 %v227, %v460
        %470 = vst [vmem:[#allocation2] sm:$0xff] %v462
        %471 = vst [vmem:[#allocation2 + $0x8] sm:$0xff] %v463
        %472 = vst [vmem:[#allocation2 + $0x10] sm:$0xff] %v464
        %473 = vst [vmem:[#allocation2 + $0x18] sm:$0xff] %v465
        %474 = vst [vmem:[#allocation2 + $0x20] sm:$0xff] %v466
        %475 = vst [vmem:[#allocation2 + $0x28] sm:$0xff] %v467
        %476 = vst [vmem:[#allocation2 + $0x30] sm:$0xff] %v468
        %477 = vst [vmem:[#allocation2 + $0x38] sm:$0xff] %v469
        // Predicated region
        $region33: #{sharable_attention.3} parent=27 // pred_check
          %p478 = pneg %p208
        $region34: #{sharable_attention.3} parent=27 // pred_check_branch
          %480 = sbr.rel (%p478) target = $region36
        $region35: #{sharable_attention.3} parent=27 // pred_region
          %v481 = vld [vmem:[#allocation2] sm:$0xff]
          %v482 = vld [vmem:[#allocation2 + $0x8] sm:$0xff]
          %v483 = vld [vmem:[#allocation2 + $0x10] sm:$0xff]
          %v484 = vld [vmem:[#allocation2 + $0x18] sm:$0xff]
          %v485 = vld [vmem:[#allocation2 + $0x20] sm:$0xff]
          %v486 = vld [vmem:[#allocation2 + $0x28] sm:$0xff]
          %v487 = vld [vmem:[#allocation2 + $0x30] sm:$0xff]
          %v488 = vld [vmem:[#allocation2 + $0x38] sm:$0xff]
          %v489 = vpack.c.bf16 %v483, %v481
          %v490 = vpack.c.bf16 %v484, %v482
          %v491 = vpack.c.bf16 %v487, %v485
          %v492 = vpack.c.bf16 %v488, %v486
          %v497 = vunpack.c.l.b16 %v489
          %v498 = vunpack.c.l.b16 %v490
          %v499 = vunpack.c.h.b16 %v489
          %v500 = vunpack.c.h.b16 %v490
          %v501 = vunpack.c.l.b16 %v491
          %v502 = vunpack.c.l.b16 %v492
          %v503 = vunpack.c.h.b16 %v491
          %v504 = vunpack.c.h.b16 %v492
          %v505 = vpack.c.b16 %v498, %v497
          %v506 = vpack.c.b16 %v500, %v499
          %v507 = vpack.c.b16 %v502, %v501
          %v508 = vpack.c.b16 %v504, %v503
          %513 = vst [vmem:[%s186] sm:$0xff] %v505
          %514 = vst [vmem:[%s186 + $0x8] sm:$0xff] %v506
          %515 = vst [vmem:[%s186 + $0x10] sm:$0xff] %v507
          %516 = vst [vmem:[%s186 + $0x18] sm:$0xff] %v508
        $region36: #{sharable_attention.3} parent=27 // pred_fallthru
          _
        %s517 = sand.u32 %s98, 1
        %s518 = sand.u32 %s98, 1
        %s519 = smul.addr %s518, 32
        %s520 = scalar_lea.vmem [#allocation3], %s519
        // Predicated region
        $region37: #{sharable_attention.3} parent=27 // pred_check
          %p521 = pneg %p108
        $region38: #{sharable_attention.3} parent=27 // pred_check_branch
          %523 = sbr.rel (%p521) target = $region40
        $region39: #{sharable_attention.3} parent=27 // pred_region
          %s524 = smul.u32 4, %s18
          %s525 = smul.u32 2, %s19
          %s526 = smul.addr %s524, 6
          %s527 = sadd.s32 %s525, %s526
          %s528 = smul.addr %s527, 4
          %s529 = scalar_lea.vmem %s2, %s528
          // Predicated region
          $region41: #{sharable_attention.3} parent=39 // pred_check
            _
          $region42: #{sharable_attention.3} parent=39 // pred_check_branch
            %531 = sbr.rel (0) target = $region44
          $region43: #{sharable_attention.3} parent=39 // pred_region
            // Predicated region
            $region45: #{sharable_attention.3} parent=43 // pred_check
              _
            $region46: #{sharable_attention.3} parent=43 // pred_check_branch
              %533 = sbr.rel (0) target = $region48
            $region47: #{sharable_attention.3} parent=43 // pred_region
              // Predicated region
              $region60: #{sharable_attention.3} parent=47 // pred_check
                _
              $region61: #{sharable_attention.3} parent=47 // pred_check_branch
                %554 = sbr.rel (0) target = $region63
              $region62: #{sharable_attention.3} parent=47 // pred_region
                loop: start=0, step=1, limit=1
                $region64: #{sharable_attention.3} parent=62 // loop_pre_header
                  _
                $region65: #{sharable_attention.3} parent=62 // loop_header
                  %s556 = sphi 0, %s560
                  %p557 = scmp.ge.s32.totalorder %s556, 1
                  %s561 = sphi %s520, %s520
                  %s562 = sphi %s529, %s529
                $region66: #{sharable_attention.3} parent=62 // loop_header_branch
                  %559 = sbr.rel (%p557) target = $region70
                $region67: #{sharable_attention.3} parent=62 // loop_body
                  %v563 = vld [vmem:[%s561] sm:$0xff]
                  %564 = vst [vmem:[%s562] sm:$0xff] %v563
                  %v565 = vld [vmem:[%s561 + $0x8] sm:$0xff]
                  %566 = vst [vmem:[%s562 + $0x18] sm:$0xff] %v565
                  %v567 = vld [vmem:[%s561 + $0x10] sm:$0xff]
                  %568 = vst [vmem:[%s562 + $0x30] sm:$0xff] %v567
                  %v569 = vld [vmem:[%s561 + $0x18] sm:$0xff]
                  %570 = vst [vmem:[%s562 + $0x48] sm:$0xff] %v569
                $region68: #{sharable_attention.3} parent=62 // loop_footer
                  %s560 = sadd.s32 1, %s556
                $region69: #{sharable_attention.3} parent=62 // loop_footer_branch
                  %555 = sbr.rel target = $region65
                $region70: #{sharable_attention.3} parent=62 // loop_exit
                  _
              $region63: #{sharable_attention.3} parent=47 // pred_fallthru
                _
              // Predicated region
              $region71: #{sharable_attention.3} parent=47 // pred_check
                _
              $region72: #{sharable_attention.3} parent=47 // pred_check_branch
                %572 = sbr.rel target = $region74
              $region73: #{sharable_attention.3} parent=47 // pred_region
                _
              $region74: #{sharable_attention.3} parent=47 // pred_fallthru
                _
            $region48: #{sharable_attention.3} parent=43 // pred_fallthru
              _
            // Predicated region
            $region49: #{sharable_attention.3} parent=43 // pred_check
              _
            $region50: #{sharable_attention.3} parent=43 // pred_check_branch
              %535 = sbr.rel target = $region52
            $region51: #{sharable_attention.3} parent=43 // pred_region
              loop: start=0, step=1, limit=1
              $region53: #{sharable_attention.3} parent=51 // loop_pre_header
                _
              $region54: #{sharable_attention.3} parent=51 // loop_header
                %s538 = sphi 0, %s542
                %p539 = scmp.ge.s32.totalorder %s538, 1
                %s543 = sphi %s520, %s520
                %s544 = sphi %s529, %s529
              $region55: #{sharable_attention.3} parent=51 // loop_header_branch
                %541 = sbr.rel (%p539) target = $region59
              $region56: #{sharable_attention.3} parent=51 // loop_body
                %v545 = vld [vmem:[%s543] sm:$0xff]
                %546 = vst [vmem:[%s544] sm:$0xff] %v545
                %v547 = vld [vmem:[%s543 + $0x8] sm:$0xff]
                %548 = vst [vmem:[%s544 + $0x18] sm:$0xff] %v547
                %v549 = vld [vmem:[%s543 + $0x10] sm:$0xff]
                %550 = vst [vmem:[%s544 + $0x30] sm:$0xff] %v549
                %v551 = vld [vmem:[%s543 + $0x18] sm:$0xff]
                %552 = vst [vmem:[%s544 + $0x48] sm:$0xff] %v551
              $region57: #{sharable_attention.3} parent=51 // loop_footer
                %s542 = sadd.s32 1, %s538
              $region58: #{sharable_attention.3} parent=51 // loop_footer_branch
                %537 = sbr.rel target = $region54
              $region59: #{sharable_attention.3} parent=51 // loop_exit
                _
            $region52: #{sharable_attention.3} parent=43 // pred_fallthru
              _
          $region44: #{sharable_attention.3} parent=39 // pred_fallthru
            _
          %573 = vnop
        $region40: #{sharable_attention.3} parent=27 // pred_fallthru
          _
      $region28: #{sharable_attention.3} parent=5 // pred_fallthru
        _
      %p574 = scmp.le.s32.totalorder 2, %s8
      // Predicated region
      $region75: #{sharable_attention.3} parent=5 // pred_check
        %p575 = pneg %p574
      $region76: #{sharable_attention.3} parent=5 // pred_check_branch
        %577 = sbr.rel (%p575) target = $region78
      $region77: #{sharable_attention.3} parent=5 // pred_region
        %s578 = ssub.s32 %s8, 2
        // Predicated region
        $region79: #{sharable_attention.3} parent=77 // pred_check
          %p579 = pneg %p114
        $region80: #{sharable_attention.3} parent=77 // pred_check_branch
          %581 = sbr.rel (%p579) target = $region82
        $region81: #{sharable_attention.3} parent=77 // pred_region
          %s582 = sand.u32 %s99, 1
          %s583 = sand.u32 %s99, 1
          %s584 = smul.addr %s583, 32
          %s585 = scalar_lea.vmem [#allocation3], %s584
        $region82: #{sharable_attention.3} parent=77 // pred_fallthru
          _
      $region78: #{sharable_attention.3} parent=5 // pred_fallthru
        _
    $region6: #{sharable_attention.3} parent=1 // loop_footer
      %s12 = sadd.s32 1, %s8
    $region7: #{sharable_attention.3} parent=1 // loop_footer_branch
      %7 = sbr.rel target = $region3
    $region8: #{sharable_attention.3} parent=1 // loop_exit
      _

</llo_original>
